<compile_context>
chip_gen: v5e
topology: v5e:2x2
jax: 0.10.0
libtpu: 0.0.40
codegen_flags: <defaults>
</compile_context>

<pallas_src>
import jax
import jax.numpy as jnp
from jax.experimental import pallas as pl
from jax.experimental.pallas import tpu as pltpu

SCAN_DIM = 480
SCAN_PAD = 512                    # 480 padded to lane-aligned 4 x 128
STATE_DIM = 6
ACT_DIM = 2
SA_DIM = STATE_DIM + ACT_DIM      # 8


def _round_up(x, m):
    return (x + m - 1) // m * m


def _qfunc_kernel(scan_ref, sa_ref,
                  w1, b1, w2, b2, w3, b3,
                  w4, b4, w5, b5,
                  w6s, w6t, b6, w7, b7,
                  out_ref):
    f32 = jnp.float32
    relu = lambda x: jnp.maximum(x, 0.0)

    # --- scan branch: 512(padded 480) -> 512 -> 512 -> 32 ---
    h = relu(jnp.dot(scan_ref[...], w1[...], preferred_element_type=f32) + b1[...])
    h = relu(jnp.dot(h, w2[...], preferred_element_type=f32) + b2[...])
    scan_feat = relu(jnp.dot(h, w3[...], preferred_element_type=f32) + b3[...])      # (TB, 32)

    # --- state branch: cat([state, act]) (done in wrapper) -> 64 -> 32 ---
    s = relu(jnp.dot(sa_ref[...], w4[...], preferred_element_type=f32) + b4[...])
    state_feat = relu(jnp.dot(s, w5[...], preferred_element_type=f32) + b5[...])     # (TB, 32)

    # --- head: cat([scan_feat, state_feat]) -> 64 -> 1 (concat folded into split matmul) ---
    o = relu(jnp.dot(scan_feat, w6s[...], preferred_element_type=f32)
             + jnp.dot(state_feat, w6t[...], preferred_element_type=f32)
             + b6[...])
    out_ref[...] = jnp.dot(o, w7[...], preferred_element_type=f32) + b7[...]         # (TB, 1)


def mlp_qfunction(obs, act, kparams, *, block_b=256):
    """obs: (B, 486) f32, act: (B, 2) f32 -> (B,) f32.

    kparams = prepare_params(init_params(...)) (kernel-layout parameters).
    """
    B = obs.shape[0]
    TB = min(block_b, _round_up(B, 8))         # batch tile (sublane-aligned)
    Bp = _round_up(B, TB)                      # padded batch (multiple of TB)

    # Wrapper-side prep: pad scan features 480 -> 512, merge state/act concat,
    # pad batch up to a whole number of tiles.
    scan = jnp.pad(obs[:, :SCAN_DIM],
                   ((0, Bp - B), (0, SCAN_PAD - SCAN_DIM)))
    sa = jnp.pad(jnp.concatenate(
        [obs[:, SCAN_DIM:SCAN_DIM + STATE_DIM], act], axis=-1),
        ((0, Bp - B), (0, 0)))

    grid = (Bp // TB,)

    def batch_spec(width):
        return pl.BlockSpec((TB, width), lambda i: (i, 0))

    def const_spec(arr):
        return pl.BlockSpec(arr.shape, lambda i: (0, 0))

    in_specs = ([batch_spec(SCAN_PAD), batch_spec(SA_DIM)]
                + [const_spec(p) for p in kparams])

    flops = 2 * Bp * (SCAN_PAD * 512 + 512 * 512 + 512 * 32
                      + SA_DIM * 64 + 64 * 32 + 64 * 64 + 64 * 1)
    weight_bytes = sum(int(p.size) * p.dtype.itemsize for p in kparams)
    bytes_accessed = Bp * (SCAN_PAD + SA_DIM + 1) * 4 + weight_bytes

    out = pl.pallas_call(
        _qfunc_kernel,
        out_shape=jax.ShapeDtypeStruct((Bp, 1), jnp.float32),
        grid=grid,
        in_specs=in_specs,
        out_specs=pl.BlockSpec((TB, 1), lambda i: (i, 0)),
        compiler_params=pltpu.CompilerParams(
            dimension_semantics=("parallel",)),
        cost_estimate=pl.CostEstimate(
            flops=flops, transcendentals=0, bytes_accessed=bytes_accessed),
    )(scan, sa, *kparams)

    return out[:B, 0]


def init_params(key):
    """Deterministic synthetic parameters; weights stored as [in, out]
    (y = x @ W + b, math-equivalent to torch's x @ W.T)."""
    def linear(k, fan_in, fan_out):
        kw, kb = jax.random.split(k)
        bound = 1.0 / jnp.sqrt(fan_in)
        w = jax.random.uniform(kw, (fan_in, fan_out), jnp.float32, -bound, bound)
        b = jax.random.uniform(kb, (1, fan_out), jnp.float32, -bound, bound)
        return w, b

    keys = jax.random.split(key, 7)
    w1, b1 = linear(keys[0], SCAN_DIM, 512)
    w2, b2 = linear(keys[1], 512, 512)
    w3, b3 = linear(keys[2], 512, 32)
    w4, b4 = linear(keys[3], SA_DIM, 64)
    w5, b5 = linear(keys[4], 64, 32)
    w6, b6 = linear(keys[5], 64, 64)
    w7, b7 = linear(keys[6], 64, 1)
    return (w1, b1, w2, b2, w3, b3, w4, b4, w5, b5, w6, b6, w7, b7)


def prepare_params(params):
    """Raw (torch-layout) params -> kernel-layout params (done once)."""
    (w1, b1, w2, b2, w3, b3, w4, b4, w5, b5, w6, b6, w7, b7) = params
    w1p = jnp.pad(w1, ((0, SCAN_PAD - SCAN_DIM), (0, 0)))  # zero rows: no math change
    w6s, w6t = w6[:32], w6[32:]                            # fold cat([scan, state]) into split matmul
    return (w1p, b1, w2, b2, w3, b3, w4, b4, w5, b5, w6s, w6t, b6, w7, b7)


def reference(obs, act, params):
    (w1, b1, w2, b2, w3, b3, w4, b4, w5, b5, w6, b6, w7, b7) = params
    relu = lambda x: jnp.maximum(x, 0.0)
    scan = obs[:, :SCAN_DIM]
    state = obs[:, SCAN_DIM:SCAN_DIM + STATE_DIM]
    h = relu(scan @ w1 + b1)
    h = relu(h @ w2 + b2)
    h = relu(h @ w3 + b3)
    st = jnp.concatenate([state, act], -1)
    s = relu(st @ w4 + b4)
    s = relu(s @ w5 + b5)
    o = relu(jnp.concatenate([h, s], -1) @ w6 + b6)
    return jnp.squeeze(o @ w7 + b7, -1)


if __name__ == "__main__":
    key = jax.random.PRNGKey(0)
    kp, ko, ka, ko2, ka2 = jax.random.split(key, 5)

    raw_params = init_params(kp)
    kparams = prepare_params(raw_params)

    # Small demo batch (consistent with the module's forward signature).
    B1 = 8
    obs1 = jax.random.normal(ko, (B1, SCAN_DIM + STATE_DIM), jnp.float32)
    act1 = jax.random.normal(ka, (B1, ACT_DIM), jnp.float32)
    q1 = jax.block_until_ready(mlp_qfunction(obs1, act1, kparams))
    r1 = reference(obs1, act1, raw_params)
    assert q1.shape == (B1,)
    assert jnp.allclose(q1, r1, atol=1e-4, rtol=1e-4), (q1, r1)

    # Larger, non-tile-multiple batch to exercise the batch grid + padding path.
    B2 = 300
    obs2 = jax.random.normal(ko2, (B2, SCAN_DIM + STATE_DIM), jnp.float32)
    act2 = jax.random.normal(ka2, (B2, ACT_DIM), jnp.float32)
    q2 = jax.block_until_ready(mlp_qfunction(obs2, act2, kparams))
    r2 = reference(obs2, act2, raw_params)
    assert q2.shape == (B2,)
    assert jnp.allclose(q2, r2, atol=1e-4, rtol=1e-4), (q2, r2)

    print("KERNEL_OK")
</pallas_src>

<mosaic_0001>
module attributes {stable_mosaic.version = 11 : i64} {
  func.func @_qfunc_kernel(%arg0: i32, %arg1: memref<8x512xf32, #tpu.memory_space<vmem>>, %arg2: memref<8x8xf32, #tpu.memory_space<vmem>>, %arg3: memref<512x512xf32, #tpu.memory_space<vmem>>, %arg4: memref<1x512xf32, #tpu.memory_space<vmem>>, %arg5: memref<512x512xf32, #tpu.memory_space<vmem>>, %arg6: memref<1x512xf32, #tpu.memory_space<vmem>>, %arg7: memref<512x32xf32, #tpu.memory_space<vmem>>, %arg8: memref<1x32xf32, #tpu.memory_space<vmem>>, %arg9: memref<8x64xf32, #tpu.memory_space<vmem>>, %arg10: memref<1x64xf32, #tpu.memory_space<vmem>>, %arg11: memref<64x32xf32, #tpu.memory_space<vmem>>, %arg12: memref<1x32xf32, #tpu.memory_space<vmem>>, %arg13: memref<32x64xf32, #tpu.memory_space<vmem>>, %arg14: memref<32x64xf32, #tpu.memory_space<vmem>>, %arg15: memref<1x64xf32, #tpu.memory_space<vmem>>, %arg16: memref<64x1xf32, #tpu.memory_space<vmem>>, %arg17: memref<1x1xf32, #tpu.memory_space<vmem>>, %arg18: memref<8x1xf32, #tpu.memory_space<vmem>>) attributes {dimension_semantics = [#tpu.dimension_semantics<parallel>], iteration_bounds = array<i64: 1>, scalar_prefetch = 0 : i64, scratch_operands = 0 : i64, tpu.core_type = #tpu.core_type<tc>, window_params = [{transform_indices = @transform_0, window_bounds = array<i64: 8, 512>}, {transform_indices = @transform_1, window_bounds = array<i64: 8, 8>}, {pipeline_mode = #tpu.pipeline_mode<synchronous>, transform_indices = @transform_2, window_bounds = array<i64: 512, 512>}, {pipeline_mode = #tpu.pipeline_mode<synchronous>, transform_indices = @transform_3, window_bounds = array<i64: 1, 512>}, {pipeline_mode = #tpu.pipeline_mode<synchronous>, transform_indices = @transform_4, window_bounds = array<i64: 512, 512>}, {pipeline_mode = #tpu.pipeline_mode<synchronous>, transform_indices = @transform_5, window_bounds = array<i64: 1, 512>}, {pipeline_mode = #tpu.pipeline_mode<synchronous>, transform_indices = @transform_6, window_bounds = array<i64: 512, 32>}, {pipeline_mode = #tpu.pipeline_mode<synchronous>, transform_indices = @transform_7, window_bounds = array<i64: 1, 32>}, {pipeline_mode = #tpu.pipeline_mode<synchronous>, transform_indices = @transform_8, window_bounds = array<i64: 8, 64>}, {pipeline_mode = #tpu.pipeline_mode<synchronous>, transform_indices = @transform_9, window_bounds = array<i64: 1, 64>}, {pipeline_mode = #tpu.pipeline_mode<synchronous>, transform_indices = @transform_10, window_bounds = array<i64: 64, 32>}, {pipeline_mode = #tpu.pipeline_mode<synchronous>, transform_indices = @transform_11, window_bounds = array<i64: 1, 32>}, {pipeline_mode = #tpu.pipeline_mode<synchronous>, transform_indices = @transform_12, window_bounds = array<i64: 32, 64>}, {pipeline_mode = #tpu.pipeline_mode<synchronous>, transform_indices = @transform_13, window_bounds = array<i64: 32, 64>}, {pipeline_mode = #tpu.pipeline_mode<synchronous>, transform_indices = @transform_14, window_bounds = array<i64: 1, 64>}, {pipeline_mode = #tpu.pipeline_mode<synchronous>, transform_indices = @transform_15, window_bounds = array<i64: 64, 1>}, {pipeline_mode = #tpu.pipeline_mode<synchronous>, transform_indices = @transform_16, window_bounds = array<i64: 1, 1>}, {transform_indices = @transform_17, window_bounds = array<i64: 8, 1>}]} {
    %c0 = arith.constant 0 : index
    %c0_0 = arith.constant 0 : index
    %0 = vector.load %arg1[%c0, %c0_0] : memref<8x512xf32, #tpu.memory_space<vmem>>, vector<8x512xf32>
    %c0_1 = arith.constant 0 : index
    %c0_2 = arith.constant 0 : index
    %1 = vector.load %arg3[%c0_1, %c0_2] : memref<512x512xf32, #tpu.memory_space<vmem>>, vector<512x512xf32>
    %cst = arith.constant dense<0.000000e+00> : vector<8x512xf32>
    %2 = tpu.matmul %0, %1, %cst {dimension_numbers = #tpu.dot_dimension_numbers<[1], [0], [0], [1], [0, 0, 1, 1], [], []>} : vector<8x512xf32>, vector<512x512xf32>, vector<8x512xf32> -> vector<8x512xf32>
    %c0_3 = arith.constant 0 : index
    %c0_4 = arith.constant 0 : index
    %3 = vector.load %arg4[%c0_3, %c0_4] : memref<1x512xf32, #tpu.memory_space<vmem>>, vector<1x512xf32>
    %4 = vector.broadcast %3 : vector<1x512xf32> to vector<8x512xf32>
    %5 = arith.addf %2, %4 : vector<8x512xf32>
    %cst_5 = arith.constant 0.000000e+00 : f32
    %6 = vector.broadcast %cst_5 : f32 to vector<8x512xf32>
    %7 = arith.maximumf %5, %6 : vector<8x512xf32>
    %c0_6 = arith.constant 0 : index
    %c0_7 = arith.constant 0 : index
    %8 = vector.load %arg5[%c0_6, %c0_7] : memref<512x512xf32, #tpu.memory_space<vmem>>, vector<512x512xf32>
    %cst_8 = arith.constant dense<0.000000e+00> : vector<8x512xf32>
    %9 = tpu.matmul %7, %8, %cst_8 {dimension_numbers = #tpu.dot_dimension_numbers<[1], [0], [0], [1], [0, 0, 1, 1], [], []>} : vector<8x512xf32>, vector<512x512xf32>, vector<8x512xf32> -> vector<8x512xf32>
    %c0_9 = arith.constant 0 : index
    %c0_10 = arith.constant 0 : index
    %10 = vector.load %arg6[%c0_9, %c0_10] : memref<1x512xf32, #tpu.memory_space<vmem>>, vector<1x512xf32>
    %11 = vector.broadcast %10 : vector<1x512xf32> to vector<8x512xf32>
    %12 = arith.addf %9, %11 : vector<8x512xf32>
    %cst_11 = arith.constant 0.000000e+00 : f32
    %13 = vector.broadcast %cst_11 : f32 to vector<8x512xf32>
    %14 = arith.maximumf %12, %13 : vector<8x512xf32>
    %c0_12 = arith.constant 0 : index
    %c0_13 = arith.constant 0 : index
    %15 = vector.load %arg7[%c0_12, %c0_13] : memref<512x32xf32, #tpu.memory_space<vmem>>, vector<512x32xf32>
    %cst_14 = arith.constant dense<0.000000e+00> : vector<8x32xf32>
    %16 = tpu.matmul %14, %15, %cst_14 {dimension_numbers = #tpu.dot_dimension_numbers<[1], [0], [0], [1], [0, 0, 1, 1], [], []>} : vector<8x512xf32>, vector<512x32xf32>, vector<8x32xf32> -> vector<8x32xf32>
    %c0_15 = arith.constant 0 : index
    %c0_16 = arith.constant 0 : index
    %17 = vector.load %arg8[%c0_15, %c0_16] : memref<1x32xf32, #tpu.memory_space<vmem>>, vector<1x32xf32>
    %18 = vector.broadcast %17 : vector<1x32xf32> to vector<8x32xf32>
    %19 = arith.addf %16, %18 : vector<8x32xf32>
    %cst_17 = arith.constant 0.000000e+00 : f32
    %20 = vector.broadcast %cst_17 : f32 to vector<8x32xf32>
    %21 = arith.maximumf %19, %20 : vector<8x32xf32>
    %c0_18 = arith.constant 0 : index
    %c0_19 = arith.constant 0 : index
    %22 = vector.load %arg2[%c0_18, %c0_19] : memref<8x8xf32, #tpu.memory_space<vmem>>, vector<8x8xf32>
    %c0_20 = arith.constant 0 : index
    %c0_21 = arith.constant 0 : index
    %23 = vector.load %arg9[%c0_20, %c0_21] : memref<8x64xf32, #tpu.memory_space<vmem>>, vector<8x64xf32>
    %cst_22 = arith.constant dense<0.000000e+00> : vector<8x64xf32>
    %24 = tpu.matmul %22, %23, %cst_22 {dimension_numbers = #tpu.dot_dimension_numbers<[1], [0], [0], [1], [0, 0, 1, 1], [], []>} : vector<8x8xf32>, vector<8x64xf32>, vector<8x64xf32> -> vector<8x64xf32>
    %c0_23 = arith.constant 0 : index
    %c0_24 = arith.constant 0 : index
    %25 = vector.load %arg10[%c0_23, %c0_24] : memref<1x64xf32, #tpu.memory_space<vmem>>, vector<1x64xf32>
    %26 = vector.broadcast %25 : vector<1x64xf32> to vector<8x64xf32>
    %27 = arith.addf %24, %26 : vector<8x64xf32>
    %cst_25 = arith.constant 0.000000e+00 : f32
    %28 = vector.broadcast %cst_25 : f32 to vector<8x64xf32>
    %29 = arith.maximumf %27, %28 : vector<8x64xf32>
    %c0_26 = arith.constant 0 : index
    %c0_27 = arith.constant 0 : index
    %30 = vector.load %arg11[%c0_26, %c0_27] : memref<64x32xf32, #tpu.memory_space<vmem>>, vector<64x32xf32>
    %cst_28 = arith.constant dense<0.000000e+00> : vector<8x32xf32>
    %31 = tpu.matmul %29, %30, %cst_28 {dimension_numbers = #tpu.dot_dimension_numbers<[1], [0], [0], [1], [0, 0, 1, 1], [], []>} : vector<8x64xf32>, vector<64x32xf32>, vector<8x32xf32> -> vector<8x32xf32>
    %c0_29 = arith.constant 0 : index
    %c0_30 = arith.constant 0 : index
    %32 = vector.load %arg12[%c0_29, %c0_30] : memref<1x32xf32, #tpu.memory_space<vmem>>, vector<1x32xf32>
    %33 = vector.broadcast %32 : vector<1x32xf32> to vector<8x32xf32>
    %34 = arith.addf %31, %33 : vector<8x32xf32>
    %cst_31 = arith.constant 0.000000e+00 : f32
    %35 = vector.broadcast %cst_31 : f32 to vector<8x32xf32>
    %36 = arith.maximumf %34, %35 : vector<8x32xf32>
    %c0_32 = arith.constant 0 : index
    %c0_33 = arith.constant 0 : index
    %37 = vector.load %arg13[%c0_32, %c0_33] : memref<32x64xf32, #tpu.memory_space<vmem>>, vector<32x64xf32>
    %cst_34 = arith.constant dense<0.000000e+00> : vector<8x64xf32>
    %38 = tpu.matmul %21, %37, %cst_34 {dimension_numbers = #tpu.dot_dimension_numbers<[1], [0], [0], [1], [0, 0, 1, 1], [], []>} : vector<8x32xf32>, vector<32x64xf32>, vector<8x64xf32> -> vector<8x64xf32>
    %c0_35 = arith.constant 0 : index
    %c0_36 = arith.constant 0 : index
    %39 = vector.load %arg14[%c0_35, %c0_36] : memref<32x64xf32, #tpu.memory_space<vmem>>, vector<32x64xf32>
    %cst_37 = arith.constant dense<0.000000e+00> : vector<8x64xf32>
    %40 = tpu.matmul %36, %39, %cst_37 {dimension_numbers = #tpu.dot_dimension_numbers<[1], [0], [0], [1], [0, 0, 1, 1], [], []>} : vector<8x32xf32>, vector<32x64xf32>, vector<8x64xf32> -> vector<8x64xf32>
    %41 = arith.addf %38, %40 : vector<8x64xf32>
    %c0_38 = arith.constant 0 : index
    %c0_39 = arith.constant 0 : index
    %42 = vector.load %arg15[%c0_38, %c0_39] : memref<1x64xf32, #tpu.memory_space<vmem>>, vector<1x64xf32>
    %43 = vector.broadcast %42 : vector<1x64xf32> to vector<8x64xf32>
    %44 = arith.addf %41, %43 : vector<8x64xf32>
    %cst_40 = arith.constant 0.000000e+00 : f32
    %45 = vector.broadcast %cst_40 : f32 to vector<8x64xf32>
    %46 = arith.maximumf %44, %45 : vector<8x64xf32>
    %c0_41 = arith.constant 0 : index
    %c0_42 = arith.constant 0 : index
    %47 = vector.load %arg16[%c0_41, %c0_42] : memref<64x1xf32, #tpu.memory_space<vmem>>, vector<64x1xf32>
    %cst_43 = arith.constant dense<0.000000e+00> : vector<8x1xf32>
    %48 = tpu.matmul %46, %47, %cst_43 {dimension_numbers = #tpu.dot_dimension_numbers<[1], [0], [0], [1], [0, 0, 1, 1], [], []>} : vector<8x64xf32>, vector<64x1xf32>, vector<8x1xf32> -> vector<8x1xf32>
    %c0_44 = arith.constant 0 : index
    %c0_45 = arith.constant 0 : index
    %49 = vector.load %arg17[%c0_44, %c0_45] : memref<1x1xf32, #tpu.memory_space<vmem>>, vector<1x1xf32>
    %50 = vector.broadcast %49 : vector<1x1xf32> to vector<8x1xf32>
    %51 = arith.addf %48, %50 : vector<8x1xf32>
    %c0_46 = arith.constant 0 : index
    %c0_47 = arith.constant 0 : index
    %52 = vector.load %arg18[%c0_46, %c0_47] : memref<8x1xf32, #tpu.memory_space<vmem>>, vector<8x1xf32>
    tpu.vector_store %arg18[%c0_46, %c0_47], %51 {strides = array<i32>} : memref<8x1xf32, #tpu.memory_space<vmem>>, vector<8x1xf32>,
    return
  }
  func.func @transform_0(%arg0: i32) -> (i32, i32) {
    %c0_i32 = arith.constant 0 : i32
    %c0_i32_0 = arith.constant 0 : i32
    return %arg0, %c0_i32 : i32, i32
  }
  func.func @transform_1(%arg0: i32) -> (i32, i32) {
    %c0_i32 = arith.constant 0 : i32
    %c0_i32_0 = arith.constant 0 : i32
    return %arg0, %c0_i32 : i32, i32
  }
  func.func @transform_2(%arg0: i32) -> (i32, i32) {
    %c0_i32 = arith.constant 0 : i32
    %c0_i32_0 = arith.constant 0 : i32
    %c0_i32_1 = arith.constant 0 : i32
    return %c0_i32, %c0_i32_0 : i32, i32
  }
  func.func @transform_3(%arg0: i32) -> (i32, i32) {
    %c0_i32 = arith.constant 0 : i32
    %c0_i32_0 = arith.constant 0 : i32
    %c0_i32_1 = arith.constant 0 : i32
    return %c0_i32, %c0_i32_0 : i32, i32
  }
  func.func @transform_4(%arg0: i32) -> (i32, i32) {
    %c0_i32 = arith.constant 0 : i32
    %c0_i32_0 = arith.constant 0 : i32
    %c0_i32_1 = arith.constant 0 : i32
    return %c0_i32, %c0_i32_0 : i32, i32
  }
  func.func @transform_5(%arg0: i32) -> (i32, i32) {
    %c0_i32 = arith.constant 0 : i32
    %c0_i32_0 = arith.constant 0 : i32
    %c0_i32_1 = arith.constant 0 : i32
    return %c0_i32, %c0_i32_0 : i32, i32
  }
  func.func @transform_6(%arg0: i32) -> (i32, i32) {
    %c0_i32 = arith.constant 0 : i32
    %c0_i32_0 = arith.constant 0 : i32
    %c0_i32_1 = arith.constant 0 : i32
    return %c0_i32, %c0_i32_0 : i32, i32
  }
  func.func @transform_7(%arg0: i32) -> (i32, i32) {
    %c0_i32 = arith.constant 0 : i32
    %c0_i32_0 = arith.constant 0 : i32
    %c0_i32_1 = arith.constant 0 : i32
    return %c0_i32, %c0_i32_0 : i32, i32
  }
  func.func @transform_8(%arg0: i32) -> (i32, i32) {
    %c0_i32 = arith.constant 0 : i32
    %c0_i32_0 = arith.constant 0 : i32
    %c0_i32_1 = arith.constant 0 : i32
    return %c0_i32, %c0_i32_0 : i32, i32
  }
  func.func @transform_9(%arg0: i32) -> (i32, i32) {
    %c0_i32 = arith.constant 0 : i32
    %c0_i32_0 = arith.constant 0 : i32
    %c0_i32_1 = arith.constant 0 : i32
    return %c0_i32, %c0_i32_0 : i32, i32
  }
  func.func @transform_10(%arg0: i32) -> (i32, i32) {
    %c0_i32 = arith.constant 0 : i32
    %c0_i32_0 = arith.constant 0 : i32
    %c0_i32_1 = arith.constant 0 : i32
    return %c0_i32, %c0_i32_0 : i32, i32
  }
  func.func @transform_11(%arg0: i32) -> (i32, i32) {
    %c0_i32 = arith.constant 0 : i32
    %c0_i32_0 = arith.constant 0 : i32
    %c0_i32_1 = arith.constant 0 : i32
    return %c0_i32, %c0_i32_0 : i32, i32
  }
  func.func @transform_12(%arg0: i32) -> (i32, i32) {
    %c0_i32 = arith.constant 0 : i32
    %c0_i32_0 = arith.constant 0 : i32
    %c0_i32_1 = arith.constant 0 : i32
    return %c0_i32, %c0_i32_0 : i32, i32
  }
  func.func @transform_13(%arg0: i32) -> (i32, i32) {
    %c0_i32 = arith.constant 0 : i32
    %c0_i32_0 = arith.constant 0 : i32
    %c0_i32_1 = arith.constant 0 : i32
    return %c0_i32, %c0_i32_0 : i32, i32
  }
  func.func @transform_14(%arg0: i32) -> (i32, i32) {
    %c0_i32 = arith.constant 0 : i32
    %c0_i32_0 = arith.constant 0 : i32
    %c0_i32_1 = arith.constant 0 : i32
    return %c0_i32, %c0_i32_0 : i32, i32
  }
  func.func @transform_15(%arg0: i32) -> (i32, i32) {
    %c0_i32 = arith.constant 0 : i32
    %c0_i32_0 = arith.constant 0 : i32
    %c0_i32_1 = arith.constant 0 : i32
    return %c0_i32, %c0_i32_0 : i32, i32
  }
  func.func @transform_16(%arg0: i32) -> (i32, i32) {
    %c0_i32 = arith.constant 0 : i32
    %c0_i32_0 = arith.constant 0 : i32
    %c0_i32_1 = arith.constant 0 : i32
    return %c0_i32, %c0_i32_0 : i32, i32
  }
  func.func @transform_17(%arg0: i32) -> (i32, i32) {
    %c0_i32 = arith.constant 0 : i32
    %c0_i32_0 = arith.constant 0 : i32
    return %arg0, %c0_i32 : i32, i32
  }
}

</mosaic_0001>

<llo_original>
// kernel: tpu_custom_call.1
$region0: #{tpu_custom_call.1}
  #allocation0 [shape = 'u32[]', space=smem, size = 0x4, offset = 0x4, fixed_abs, tag = 'smem constant byte address 0x4 - core index']
  #allocation1 [shape = 'u32[72,128]{1,0:T(1,128)}', space=vmem, size = 0x9000, scoped, tag = 'internal scratch']
  #allocation2 [shape = 'f32[1,1]{1,0:T(1,128)S(1)}', space=vmem, size = 0x200, scoped, tag = 'scoped memory for tpu_custom_call.1']
  %s0 = inlined_call_operand.vmem [shape: f32[8,512], index: 0, kind: input, shape index: {}]
  %s1 = inlined_call_operand.vmem [shape: f32[8,8], index: 1, kind: input, shape index: {}]
  %s2 = inlined_call_operand.hbm [shape: f32[512,512], index: 2, kind: input, shape index: {}]
  %s3 = inlined_call_operand.vmem [shape: f32[1,512], index: 3, kind: input, shape index: {}]
  %s4 = inlined_call_operand.hbm [shape: f32[512,512], index: 4, kind: input, shape index: {}]
  %s5 = inlined_call_operand.vmem [shape: f32[1,512], index: 5, kind: input, shape index: {}]
  %s6 = inlined_call_operand.vmem [shape: f32[512,32], index: 6, kind: input, shape index: {}]
  %s7 = inlined_call_operand.vmem [shape: f32[1,32], index: 7, kind: input, shape index: {}]
  %s8 = inlined_call_operand.vmem [shape: f32[8,64], index: 8, kind: input, shape index: {}]
  %s9 = inlined_call_operand.vmem [shape: f32[1,64], index: 9, kind: input, shape index: {}]
  %s10 = inlined_call_operand.vmem [shape: f32[64,32], index: 10, kind: input, shape index: {}]
  %s11 = inlined_call_operand.vmem [shape: f32[1,32], index: 11, kind: input, shape index: {}]
  %s12 = inlined_call_operand.vmem [shape: f32[32,64], index: 12, kind: input, shape index: {}]
  %s13 = inlined_call_operand.vmem [shape: f32[32,64], index: 13, kind: input, shape index: {}]
  %s14 = inlined_call_operand.vmem [shape: f32[1,64], index: 14, kind: input, shape index: {}]
  %s15 = inlined_call_operand.vmem [shape: f32[64,1], index: 15, kind: input, shape index: {}]
  %s16 = inlined_call_operand.<no memory space> [shape: f32[1,1], index: 16, kind: input, shape index: {}]
  %s17 = inlined_call_operand.vmem [shape: f32[8,1], index: 17, kind: output, shape index: {}]
  %s18 = sld [smem:[#allocation0]]
  $region86: #{tpu_custom_call.1} parent=0
    _
  %s20 = ssub.s32 1, %s18
  %s21 = scalar_select 0, %s20, %s18
  %v22 = vstv %s16
  %23 = vst [vmem:[#allocation2] sm:$0x1] %v22
  $region1: #{tpu_custom_call.1} parent=0
    #allocation3 [shape = 'u8[1048576]{0}', space=vmem, size = 0x100000, scoped, tag = 'input window, operand 2, single buffered']
    #allocation4 [shape = 's32[1]{0}', space=sflag, size = 0x4, scoped, tag = 'scoped memory for tpu_custom_call.1']
    #allocation5 [shape = 'u8[1048576]{0}', space=vmem, size = 0x100000, scoped, tag = 'input window, operand 4, single buffered']
    #allocation6 [shape = 's32[1]{0}', space=sflag, size = 0x4, scoped, tag = 'scoped memory for tpu_custom_call.1']
    %24 = vsyncpa [#allocation4], 0
    %25 = vsyncpa [#allocation6], 0
    // Predicated region
    $region2: #{tpu_custom_call.1} parent=1 // pred_check
      _
    $region3: #{tpu_custom_call.1} parent=1 // pred_check_branch
      %27 = sbr.rel (0) target = $region5
    $region4: #{tpu_custom_call.1} parent=1 // pred_region
      _
    $region5: #{tpu_custom_call.1} parent=1 // pred_fallthru
      _
    // Predicated region
    $region6: #{tpu_custom_call.1} parent=1 // pred_check
      _
    $region7: #{tpu_custom_call.1} parent=1 // pred_check_branch
      %29 = sbr.rel (0) target = $region9
    $region8: #{tpu_custom_call.1} parent=1 // pred_region
      _
    $region9: #{tpu_custom_call.1} parent=1 // pred_fallthru
      _
    // Predicated region
    $region10: #{tpu_custom_call.1} parent=1 // pred_check
      _
    $region11: #{tpu_custom_call.1} parent=1 // pred_check_branch
      %31 = sbr.rel (0) target = $region13
    $region12: #{tpu_custom_call.1} parent=1 // pred_region
      %33 = vsyncadd [#allocation4], 0
      %s34 = sshll.u32 %s2, 4
      %s35 = int_to_ptr.hbm [resolvable:$true] %s34
      %s36 = sshll.u32 [#allocation3], 4
      %s37 = int_to_ptr.vmem [resolvable:$true] %s36
      %42 = dma.hbm_to_vmem [thread:$0]  %s35, 32768, %s37, [#allocation4], 512, 512, 32
    $region13: #{tpu_custom_call.1} parent=1 // pred_fallthru
      _
    // Predicated region
    $region14: #{tpu_custom_call.1} parent=1 // pred_check
      _
    $region15: #{tpu_custom_call.1} parent=1 // pred_check_branch
      %44 = sbr.rel (0) target = $region17
    $region16: #{tpu_custom_call.1} parent=1 // pred_region
      _
    $region17: #{tpu_custom_call.1} parent=1 // pred_fallthru
      _
    // Predicated region
    $region18: #{tpu_custom_call.1} parent=1 // pred_check
      _
    $region19: #{tpu_custom_call.1} parent=1 // pred_check_branch
      %46 = sbr.rel (0) target = $region21
    $region20: #{tpu_custom_call.1} parent=1 // pred_region
      %48 = vsyncadd [#allocation6], 0
      %s49 = sshll.u32 %s4, 4
      %s50 = int_to_ptr.hbm [resolvable:$true] %s49
      %s51 = sshll.u32 [#allocation5], 4
      %s52 = int_to_ptr.vmem [resolvable:$true] %s51
      %57 = dma.hbm_to_vmem [thread:$0]  %s50, 32768, %s52, [#allocation6], 512, 512, 32
    $region21: #{tpu_custom_call.1} parent=1 // pred_fallthru
      _
    // Predicated region
    $region22: #{tpu_custom_call.1} parent=1 // pred_check
      _
    $region23: #{tpu_custom_call.1} parent=1 // pred_check_branch
      %59 = sbr.rel (0) target = $region25
    $region24: #{tpu_custom_call.1} parent=1 // pred_region
      _
    $region25: #{tpu_custom_call.1} parent=1 // pred_fallthru
      _
    // Predicated region
    $region26: #{tpu_custom_call.1} parent=1 // pred_check
      _
    $region27: #{tpu_custom_call.1} parent=1 // pred_check_branch
      %61 = sbr.rel (0) target = $region29
    $region28: #{tpu_custom_call.1} parent=1 // pred_region
      _
    $region29: #{tpu_custom_call.1} parent=1 // pred_fallthru
      _
    // Predicated region
    $region30: #{tpu_custom_call.1} parent=1 // pred_check
      _
    $region31: #{tpu_custom_call.1} parent=1 // pred_check_branch
      %63 = sbr.rel (0) target = $region33
    $region32: #{tpu_custom_call.1} parent=1 // pred_region
      _
    $region33: #{tpu_custom_call.1} parent=1 // pred_fallthru
      _
    // Predicated region
    $region34: #{tpu_custom_call.1} parent=1 // pred_check
      _
    $region35: #{tpu_custom_call.1} parent=1 // pred_check_branch
      %65 = sbr.rel (0) target = $region37
    $region36: #{tpu_custom_call.1} parent=1 // pred_region
      _
    $region37: #{tpu_custom_call.1} parent=1 // pred_fallthru
      _
    // Predicated region
    $region38: #{tpu_custom_call.1} parent=1 // pred_check
      _
    $region39: #{tpu_custom_call.1} parent=1 // pred_check_branch
      %67 = sbr.rel (0) target = $region41
    $region40: #{tpu_custom_call.1} parent=1 // pred_region
      _
    $region41: #{tpu_custom_call.1} parent=1 // pred_fallthru
      _
    // Predicated region
    $region42: #{tpu_custom_call.1} parent=1 // pred_check
      _
    $region43: #{tpu_custom_call.1} parent=1 // pred_check_branch
      %69 = sbr.rel (0) target = $region45
    $region44: #{tpu_custom_call.1} parent=1 // pred_region
      _
    $region45: #{tpu_custom_call.1} parent=1 // pred_fallthru
      _
    // Predicated region
    $region46: #{tpu_custom_call.1} parent=1 // pred_check
      _
    $region47: #{tpu_custom_call.1} parent=1 // pred_check_branch
      %71 = sbr.rel (0) target = $region49
    $region48: #{tpu_custom_call.1} parent=1 // pred_region
      _
    $region49: #{tpu_custom_call.1} parent=1 // pred_fallthru
      _
    // Predicated region
    $region50: #{tpu_custom_call.1} parent=1 // pred_check
      _
    $region51: #{tpu_custom_call.1} parent=1 // pred_check_branch
      %73 = sbr.rel (0) target = $region53
    $region52: #{tpu_custom_call.1} parent=1 // pred_region
      _
    $region53: #{tpu_custom_call.1} parent=1 // pred_fallthru
      _
    // Predicated region
    $region54: #{tpu_custom_call.1} parent=1 // pred_check
      _
    $region55: #{tpu_custom_call.1} parent=1 // pred_check_branch
      %75 = sbr.rel (0) target = $region57
    $region56: #{tpu_custom_call.1} parent=1 // pred_region
      _
    $region57: #{tpu_custom_call.1} parent=1 // pred_fallthru
      _
    // Predicated region
    $region58: #{tpu_custom_call.1} parent=1 // pred_check
      _
    $region59: #{tpu_custom_call.1} parent=1 // pred_check_branch
      %77 = sbr.rel (0) target = $region61
    $region60: #{tpu_custom_call.1} parent=1 // pred_region
      _
    $region61: #{tpu_custom_call.1} parent=1 // pred_fallthru
      _
    // Predicated region
    $region62: #{tpu_custom_call.1} parent=1 // pred_check
      _
    $region63: #{tpu_custom_call.1} parent=1 // pred_check_branch
      %79 = sbr.rel (0) target = $region65
    $region64: #{tpu_custom_call.1} parent=1 // pred_region
      _
    $region65: #{tpu_custom_call.1} parent=1 // pred_fallthru
      _
    // Predicated region
    $region66: #{tpu_custom_call.1} parent=1 // pred_check
      _
    $region67: #{tpu_custom_call.1} parent=1 // pred_check_branch
      %81 = sbr.rel (0) target = $region69
    $region68: #{tpu_custom_call.1} parent=1 // pred_region
      _
    $region69: #{tpu_custom_call.1} parent=1 // pred_fallthru
      _
    // Predicated region
    $region70: #{tpu_custom_call.1} parent=1 // pred_check
      _
    $region71: #{tpu_custom_call.1} parent=1 // pred_check_branch
      %83 = sbr.rel (0) target = $region73
    $region72: #{tpu_custom_call.1} parent=1 // pred_region
      %85 = dma.done [#allocation4], 32768
    $region73: #{tpu_custom_call.1} parent=1 // pred_fallthru
      _
    // Predicated region
    $region74: #{tpu_custom_call.1} parent=1 // pred_check
      _
    $region75: #{tpu_custom_call.1} parent=1 // pred_check_branch
      %87 = sbr.rel (0) target = $region77
    $region76: #{tpu_custom_call.1} parent=1 // pred_region
      %89 = dma.done [#allocation6], 32768
    $region77: #{tpu_custom_call.1} parent=1 // pred_fallthru
      _
    %v90 = vld [vmem:[%s0] sm:$0xff]
    %v91 = vld [vmem:[%s0 + $0x8] sm:$0xff]
    %v92 = vld [vmem:[%s0 + $0x10] sm:$0xff]
    %v93 = vld [vmem:[%s0 + $0x18] sm:$0xff]
    %v94 = vld [vmem:[#allocation3] sm:$0xff]
    %v95 = vld [vmem:[#allocation3 + $0x8] sm:$0xff]
    %v96 = vld [vmem:[#allocation3 + $0x10] sm:$0xff]
    %v97 = vld [vmem:[#allocation3 + $0x18] sm:$0xff]
    %v98 = vld [vmem:[#allocation3 + $0x20] sm:$0xff]
    %v99 = vld [vmem:[#allocation3 + $0x28] sm:$0xff]
    %v100 = vld [vmem:[#allocation3 + $0x30] sm:$0xff]
    %v101 = vld [vmem:[#allocation3 + $0x38] sm:$0xff]
    %v102 = vld [vmem:[#allocation3 + $0x40] sm:$0xff]
    %v103 = vld [vmem:[#allocation3 + $0x48] sm:$0xff]
    %v104 = vld [vmem:[#allocation3 + $0x50] sm:$0xff]
    %v105 = vld [vmem:[#allocation3 + $0x58] sm:$0xff]
    %v106 = vld [vmem:[#allocation3 + $0x60] sm:$0xff]
    %v107 = vld [vmem:[#allocation3 + $0x68] sm:$0xff]
    %v108 = vld [vmem:[#allocation3 + $0x70] sm:$0xff]
    %v109 = vld [vmem:[#allocation3 + $0x78] sm:$0xff]
    %v110 = vld [vmem:[#allocation3 + $0x80] sm:$0xff]
    %v111 = vld [vmem:[#allocation3 + $0x88] sm:$0xff]
    %v112 = vld [vmem:[#allocation3 + $0x90] sm:$0xff]
    %v113 = vld [vmem:[#allocation3 + $0x98] sm:$0xff]
    %v114 = vld [vmem:[#allocation3 + $0xa0] sm:$0xff]
    %v115 = vld [vmem:[#allocation3 + $0xa8] sm:$0xff]
    %v116 = vld [vmem:[#allocation3 + $0xb0] sm:$0xff]
    %v117 = vld [vmem:[#allocation3 + $0xb8] sm:$0xff]
    %v118 = vld [vmem:[#allocation3 + $0xc0] sm:$0xff]
    %v119 = vld [vmem:[#allocation3 + $0xc8] sm:$0xff]
    %v120 = vld [vmem:[#allocation3 + $0xd0] sm:$0xff]
    %v121 = vld [vmem:[#allocation3 + $0xd8] sm:$0xff]
    %v122 = vld [vmem:[#allocation3 + $0xe0] sm:$0xff]
    %v123 = vld [vmem:[#allocation3 + $0xe8] sm:$0xff]
    %v124 = vld [vmem:[#allocation3 + $0xf0] sm:$0xff]
    %v125 = vld [vmem:[#allocation3 + $0xf8] sm:$0xff]
    %v126 = vld [vmem:[#allocation3 + $0x100] sm:$0xff]
    %v127 = vld [vmem:[#allocation3 + $0x108] sm:$0xff]
    %v128 = vld [vmem:[#allocation3 + $0x110] sm:$0xff]
    %v129 = vld [vmem:[#allocation3 + $0x118] sm:$0xff]
    %v130 = vld [vmem:[#allocation3 + $0x120] sm:$0xff]
    %v131 = vld [vmem:[#allocation3 + $0x128] sm:$0xff]
    %v132 = vld [vmem:[#allocation3 + $0x130] sm:$0xff]
    %v133 = vld [vmem:[#allocation3 + $0x138] sm:$0xff]
    %v134 = vld [vmem:[#allocation3 + $0x140] sm:$0xff]
    %v135 = vld [vmem:[#allocation3 + $0x148] sm:$0xff]
    %v136 = vld [vmem:[#allocation3 + $0x150] sm:$0xff]
    %v137 = vld [vmem:[#allocation3 + $0x158] sm:$0xff]
    %v138 = vld [vmem:[#allocation3 + $0x160] sm:$0xff]
    %v139 = vld [vmem:[#allocation3 + $0x168] sm:$0xff]
    %v140 = vld [vmem:[#allocation3 + $0x170] sm:$0xff]
    %v141 = vld [vmem:[#allocation3 + $0x178] sm:$0xff]
    %v142 = vld [vmem:[#allocation3 + $0x180] sm:$0xff]
    %v143 = vld [vmem:[#allocation3 + $0x188] sm:$0xff]
    %v144 = vld [vmem:[#allocation3 + $0x190] sm:$0xff]
    %v145 = vld [vmem:[#allocation3 + $0x198] sm:$0xff]
    %v146 = vld [vmem:[#allocation3 + $0x1a0] sm:$0xff]
    %v147 = vld [vmem:[#allocation3 + $0x1a8] sm:$0xff]
    %v148 = vld [vmem:[#allocation3 + $0x1b0] sm:$0xff]
    %v149 = vld [vmem:[#allocation3 + $0x1b8] sm:$0xff]
    %v150 = vld [vmem:[#allocation3 + $0x1c0] sm:$0xff]
    %v151 = vld [vmem:[#allocation3 + $0x1c8] sm:$0xff]
    %v152 = vld [vmem:[#allocation3 + $0x1d0] sm:$0xff]
    %v153 = vld [vmem:[#allocation3 + $0x1d8] sm:$0xff]
    %v154 = vld [vmem:[#allocation3 + $0x1e0] sm:$0xff]
    %v155 = vld [vmem:[#allocation3 + $0x1e8] sm:$0xff]
    %v156 = vld [vmem:[#allocation3 + $0x1f0] sm:$0xff]
    %v157 = vld [vmem:[#allocation3 + $0x1f8] sm:$0xff]
    %v158 = vld [vmem:[#allocation3 + $0x200] sm:$0xff]
    %v159 = vld [vmem:[#allocation3 + $0x208] sm:$0xff]
    %v160 = vld [vmem:[#allocation3 + $0x210] sm:$0xff]
    %v161 = vld [vmem:[#allocation3 + $0x218] sm:$0xff]
    %v162 = vld [vmem:[#allocation3 + $0x220] sm:$0xff]
    %v163 = vld [vmem:[#allocation3 + $0x228] sm:$0xff]
    %v164 = vld [vmem:[#allocation3 + $0x230] sm:$0xff]
    %v165 = vld [vmem:[#allocation3 + $0x238] sm:$0xff]
    %v166 = vld [vmem:[#allocation3 + $0x240] sm:$0xff]
    %v167 = vld [vmem:[#allocation3 + $0x248] sm:$0xff]
    %v168 = vld [vmem:[#allocation3 + $0x250] sm:$0xff]
    %v169 = vld [vmem:[#allocation3 + $0x258] sm:$0xff]
    %v170 = vld [vmem:[#allocation3 + $0x260] sm:$0xff]
    %v171 = vld [vmem:[#allocation3 + $0x268] sm:$0xff]
    %v172 = vld [vmem:[#allocation3 + $0x270] sm:$0xff]
    %v173 = vld [vmem:[#allocation3 + $0x278] sm:$0xff]
    %v174 = vld [vmem:[#allocation3 + $0x280] sm:$0xff]
    %v175 = vld [vmem:[#allocation3 + $0x288] sm:$0xff]
    %v176 = vld [vmem:[#allocation3 + $0x290] sm:$0xff]
    %v177 = vld [vmem:[#allocation3 + $0x298] sm:$0xff]
    %v178 = vld [vmem:[#allocation3 + $0x2a0] sm:$0xff]
    %v179 = vld [vmem:[#allocation3 + $0x2a8] sm:$0xff]
    %v180 = vld [vmem:[#allocation3 + $0x2b0] sm:$0xff]
    %v181 = vld [vmem:[#allocation3 + $0x2b8] sm:$0xff]
    %v182 = vld [vmem:[#allocation3 + $0x2c0] sm:$0xff]
    %v183 = vld [vmem:[#allocation3 + $0x2c8] sm:$0xff]
    %v184 = vld [vmem:[#allocation3 + $0x2d0] sm:$0xff]
    %v185 = vld [vmem:[#allocation3 + $0x2d8] sm:$0xff]
    %v186 = vld [vmem:[#allocation3 + $0x2e0] sm:$0xff]
    %v187 = vld [vmem:[#allocation3 + $0x2e8] sm:$0xff]
    %v188 = vld [vmem:[#allocation3 + $0x2f0] sm:$0xff]
    %v189 = vld [vmem:[#allocation3 + $0x2f8] sm:$0xff]
    %v190 = vld [vmem:[#allocation3 + $0x300] sm:$0xff]
    %v191 = vld [vmem:[#allocation3 + $0x308] sm:$0xff]
    %v192 = vld [vmem:[#allocation3 + $0x310] sm:$0xff]
    %v193 = vld [vmem:[#allocation3 + $0x318] sm:$0xff]
    %v194 = vld [vmem:[#allocation3 + $0x320] sm:$0xff]
    %v195 = vld [vmem:[#allocation3 + $0x328] sm:$0xff]
    %v196 = vld [vmem:[#allocation3 + $0x330] sm:$0xff]
    %v197 = vld [vmem:[#allocation3 + $0x338] sm:$0xff]
    %v198 = vld [vmem:[#allocation3 + $0x340] sm:$0xff]
    %v199 = vld [vmem:[#allocation3 + $0x348] sm:$0xff]
    %v200 = vld [vmem:[#allocation3 + $0x350] sm:$0xff]
    %v201 = vld [vmem:[#allocation3 + $0x358] sm:$0xff]
    %v202 = vld [vmem:[#allocation3 + $0x360] sm:$0xff]
    %v203 = vld [vmem:[#allocation3 + $0x368] sm:$0xff]
    %v204 = vld [vmem:[#allocation3 + $0x370] sm:$0xff]
    %v205 = vld [vmem:[#allocation3 + $0x378] sm:$0xff]
    %v206 = vld [vmem:[#allocation3 + $0x380] sm:$0xff]
    %v207 = vld [vmem:[#allocation3 + $0x388] sm:$0xff]
    %v208 = vld [vmem:[#allocation3 + $0x390] sm:$0xff]
    %v209 = vld [vmem:[#allocation3 + $0x398] sm:$0xff]
    %v210 = vld [vmem:[#allocation3 + $0x3a0] sm:$0xff]
    %v211 = vld [vmem:[#allocation3 + $0x3a8] sm:$0xff]
    %v212 = vld [vmem:[#allocation3 + $0x3b0] sm:$0xff]
    %v213 = vld [vmem:[#allocation3 + $0x3b8] sm:$0xff]
    %v214 = vld [vmem:[#allocation3 + $0x3c0] sm:$0xff]
    %v215 = vld [vmem:[#allocation3 + $0x3c8] sm:$0xff]
    %v216 = vld [vmem:[#allocation3 + $0x3d0] sm:$0xff]
    %v217 = vld [vmem:[#allocation3 + $0x3d8] sm:$0xff]
    %v218 = vld [vmem:[#allocation3 + $0x3e0] sm:$0xff]
    %v219 = vld [vmem:[#allocation3 + $0x3e8] sm:$0xff]
    %v220 = vld [vmem:[#allocation3 + $0x3f0] sm:$0xff]
    %v221 = vld [vmem:[#allocation3 + $0x3f8] sm:$0xff]
    %v222 = vld [vmem:[#allocation3 + $0x400] sm:$0xff]
    %v223 = vld [vmem:[#allocation3 + $0x408] sm:$0xff]
    %v224 = vld [vmem:[#allocation3 + $0x410] sm:$0xff]
    %v225 = vld [vmem:[#allocation3 + $0x418] sm:$0xff]
    %v226 = vld [vmem:[#allocation3 + $0x420] sm:$0xff]
    %v227 = vld [vmem:[#allocation3 + $0x428] sm:$0xff]
    %v228 = vld [vmem:[#allocation3 + $0x430] sm:$0xff]
    %v229 = vld [vmem:[#allocation3 + $0x438] sm:$0xff]
    %v230 = vld [vmem:[#allocation3 + $0x440] sm:$0xff]
    %v231 = vld [vmem:[#allocation3 + $0x448] sm:$0xff]
    %v232 = vld [vmem:[#allocation3 + $0x450] sm:$0xff]
    %v233 = vld [vmem:[#allocation3 + $0x458] sm:$0xff]
    %v234 = vld [vmem:[#allocation3 + $0x460] sm:$0xff]
    %v235 = vld [vmem:[#allocation3 + $0x468] sm:$0xff]
    %v236 = vld [vmem:[#allocation3 + $0x470] sm:$0xff]
    %v237 = vld [vmem:[#allocation3 + $0x478] sm:$0xff]
    %v238 = vld [vmem:[#allocation3 + $0x480] sm:$0xff]
    %v239 = vld [vmem:[#allocation3 + $0x488] sm:$0xff]
    %v240 = vld [vmem:[#allocation3 + $0x490] sm:$0xff]
    %v241 = vld [vmem:[#allocation3 + $0x498] sm:$0xff]
    %v242 = vld [vmem:[#allocation3 + $0x4a0] sm:$0xff]
    %v243 = vld [vmem:[#allocation3 + $0x4a8] sm:$0xff]
    %v244 = vld [vmem:[#allocation3 + $0x4b0] sm:$0xff]
    %v245 = vld [vmem:[#allocation3 + $0x4b8] sm:$0xff]
    %v246 = vld [vmem:[#allocation3 + $0x4c0] sm:$0xff]
    %v247 = vld [vmem:[#allocation3 + $0x4c8] sm:$0xff]
    %v248 = vld [vmem:[#allocation3 + $0x4d0] sm:$0xff]
    %v249 = vld [vmem:[#allocation3 + $0x4d8] sm:$0xff]
    %v250 = vld [vmem:[#allocation3 + $0x4e0] sm:$0xff]
    %v251 = vld [vmem:[#allocation3 + $0x4e8] sm:$0xff]
    %v252 = vld [vmem:[#allocation3 + $0x4f0] sm:$0xff]
    %v253 = vld [vmem:[#allocation3 + $0x4f8] sm:$0xff]
    %v254 = vld [vmem:[#allocation3 + $0x500] sm:$0xff]
    %v255 = vld [vmem:[#allocation3 + $0x508] sm:$0xff]
    %v256 = vld [vmem:[#allocation3 + $0x510] sm:$0xff]
    %v257 = vld [vmem:[#allocation3 + $0x518] sm:$0xff]
    %v258 = vld [vmem:[#allocation3 + $0x520] sm:$0xff]
    %v259 = vld [vmem:[#allocation3 + $0x528] sm:$0xff]
    %v260 = vld [vmem:[#allocation3 + $0x530] sm:$0xff]
    %v261 = vld [vmem:[#allocation3 + $0x538] sm:$0xff]
    %v262 = vld [vmem:[#allocation3 + $0x540] sm:$0xff]
    %v263 = vld [vmem:[#allocation3 + $0x548] sm:$0xff]
    %v264 = vld [vmem:[#allocation3 + $0x550] sm:$0xff]
    %v265 = vld [vmem:[#allocation3 + $0x558] sm:$0xff]
    %v266 = vld [vmem:[#allocation3 + $0x560] sm:$0xff]
    %v267 = vld [vmem:[#allocation3 + $0x568] sm:$0xff]
    %v268 = vld [vmem:[#allocation3 + $0x570] sm:$0xff]
    %v269 = vld [vmem:[#allocation3 + $0x578] sm:$0xff]
    %v270 = vld [vmem:[#allocation3 + $0x580] sm:$0xff]
    %v271 = vld [vmem:[#allocation3 + $0x588] sm:$0xff]
    %v272 = vld [vmem:[#allocation3 + $0x590] sm:$0xff]
    %v273 = vld [vmem:[#allocation3 + $0x598] sm:$0xff]
    %v274 = vld [vmem:[#allocation3 + $0x5a0] sm:$0xff]
    %v275 = vld [vmem:[#allocation3 + $0x5a8] sm:$0xff]
    %v276 = vld [vmem:[#allocation3 + $0x5b0] sm:$0xff]
    %v277 = vld [vmem:[#allocation3 + $0x5b8] sm:$0xff]
    %v278 = vld [vmem:[#allocation3 + $0x5c0] sm:$0xff]
    %v279 = vld [vmem:[#allocation3 + $0x5c8] sm:$0xff]
    %v280 = vld [vmem:[#allocation3 + $0x5d0] sm:$0xff]
    %v281 = vld [vmem:[#allocation3 + $0x5d8] sm:$0xff]
    %v282 = vld [vmem:[#allocation3 + $0x5e0] sm:$0xff]
    %v283 = vld [vmem:[#allocation3 + $0x5e8] sm:$0xff]
    %v284 = vld [vmem:[#allocation3 + $0x5f0] sm:$0xff]
    %v285 = vld [vmem:[#allocation3 + $0x5f8] sm:$0xff]
    %v286 = vld [vmem:[#allocation3 + $0x600] sm:$0xff]
    %v287 = vld [vmem:[#allocation3 + $0x608] sm:$0xff]
    %v288 = vld [vmem:[#allocation3 + $0x610] sm:$0xff]
    %v289 = vld [vmem:[#allocation3 + $0x618] sm:$0xff]
    %v290 = vld [vmem:[#allocation3 + $0x620] sm:$0xff]
    %v291 = vld [vmem:[#allocation3 + $0x628] sm:$0xff]
    %v292 = vld [vmem:[#allocation3 + $0x630] sm:$0xff]
    %v293 = vld [vmem:[#allocation3 + $0x638] sm:$0xff]
    %v294 = vld [vmem:[#allocation3 + $0x640] sm:$0xff]
    %v295 = vld [vmem:[#allocation3 + $0x648] sm:$0xff]
    %v296 = vld [vmem:[#allocation3 + $0x650] sm:$0xff]
    %v297 = vld [vmem:[#allocation3 + $0x658] sm:$0xff]
    %v298 = vld [vmem:[#allocation3 + $0x660] sm:$0xff]
    %v299 = vld [vmem:[#allocation3 + $0x668] sm:$0xff]
    %v300 = vld [vmem:[#allocation3 + $0x670] sm:$0xff]
    %v301 = vld [vmem:[#allocation3 + $0x678] sm:$0xff]
    %v302 = vld [vmem:[#allocation3 + $0x680] sm:$0xff]
    %v303 = vld [vmem:[#allocation3 + $0x688] sm:$0xff]
    %v304 = vld [vmem:[#allocation3 + $0x690] sm:$0xff]
    %v305 = vld [vmem:[#allocation3 + $0x698] sm:$0xff]
    %v306 = vld [vmem:[#allocation3 + $0x6a0] sm:$0xff]
    %v307 = vld [vmem:[#allocation3 + $0x6a8] sm:$0xff]
    %v308 = vld [vmem:[#allocation3 + $0x6b0] sm:$0xff]
    %v309 = vld [vmem:[#allocation3 + $0x6b8] sm:$0xff]
    %v310 = vld [vmem:[#allocation3 + $0x6c0] sm:$0xff]
    %v311 = vld [vmem:[#allocation3 + $0x6c8] sm:$0xff]
    %v312 = vld [vmem:[#allocation3 + $0x6d0] sm:$0xff]
    %v313 = vld [vmem:[#allocation3 + $0x6d8] sm:$0xff]
    %v314 = vld [vmem:[#allocation3 + $0x6e0] sm:$0xff]
    %v315 = vld [vmem:[#allocation3 + $0x6e8] sm:$0xff]
    %v316 = vld [vmem:[#allocation3 + $0x6f0] sm:$0xff]
    %v317 = vld [vmem:[#allocation3 + $0x6f8] sm:$0xff]
    %v318 = vld [vmem:[#allocation3 + $0x700] sm:$0xff]
    %v319 = vld [vmem:[#allocation3 + $0x708] sm:$0xff]
    %v320 = vld [vmem:[#allocation3 + $0x710] sm:$0xff]
    %v321 = vld [vmem:[#allocation3 + $0x718] sm:$0xff]
    %v322 = vld [vmem:[#allocation3 + $0x720] sm:$0xff]
    %v323 = vld [vmem:[#allocation3 + $0x728] sm:$0xff]
    %v324 = vld [vmem:[#allocation3 + $0x730] sm:$0xff]
    %v325 = vld [vmem:[#allocation3 + $0x738] sm:$0xff]
    %v326 = vld [vmem:[#allocation3 + $0x740] sm:$0xff]
    %v327 = vld [vmem:[#allocation3 + $0x748] sm:$0xff]
    %v328 = vld [vmem:[#allocation3 + $0x750] sm:$0xff]
    %v329 = vld [vmem:[#allocation3 + $0x758] sm:$0xff]
    %v330 = vld [vmem:[#allocation3 + $0x760] sm:$0xff]
    %v331 = vld [vmem:[#allocation3 + $0x768] sm:$0xff]
    %v332 = vld [vmem:[#allocation3 + $0x770] sm:$0xff]
    %v333 = vld [vmem:[#allocation3 + $0x778] sm:$0xff]
    %v334 = vld [vmem:[#allocation3 + $0x780] sm:$0xff]
    %v335 = vld [vmem:[#allocation3 + $0x788] sm:$0xff]
    %v336 = vld [vmem:[#allocation3 + $0x790] sm:$0xff]
    %v337 = vld [vmem:[#allocation3 + $0x798] sm:$0xff]
    %v338 = vld [vmem:[#allocation3 + $0x7a0] sm:$0xff]
    %v339 = vld [vmem:[#allocation3 + $0x7a8] sm:$0xff]
    %v340 = vld [vmem:[#allocation3 + $0x7b0] sm:$0xff]
    %v341 = vld [vmem:[#allocation3 + $0x7b8] sm:$0xff]
    %v342 = vld [vmem:[#allocation3 + $0x7c0] sm:$0xff]
    %v343 = vld [vmem:[#allocation3 + $0x7c8] sm:$0xff]
    %v344 = vld [vmem:[#allocation3 + $0x7d0] sm:$0xff]
    %v345 = vld [vmem:[#allocation3 + $0x7d8] sm:$0xff]
    %v346 = vld [vmem:[#allocation3 + $0x7e0] sm:$0xff]
    %v347 = vld [vmem:[#allocation3 + $0x7e8] sm:$0xff]
    %v348 = vld [vmem:[#allocation3 + $0x7f0] sm:$0xff]
    %v349 = vld [vmem:[#allocation3 + $0x7f8] sm:$0xff]
    %v350 = vld [vmem:[%s3] sm:$0xf]
    %v352 = vperm.slane %v350, 0
    %v353 = vperm.slane %v350, 1
    %v354 = vperm.slane %v350, 2
    %v355 = vperm.slane %v350, 3
    %360 = vmatpush.msra.mxu0 %v154
    %361 = vmatpush.msra.mxu0 %v150
    %362 = vmatpush.msra.mxu0 %v146
    %363 = vmatpush.msra.mxu0 %v142
    %364 = vmatpush.msra.mxu0 %v138
    %365 = vmatpush.msra.mxu0 %v134
    %366 = vmatpush.msra.mxu0 %v130
    %367 = vmatpush.msra.mxu0 %v126
    %368 = vmatpush.msra.mxu0 %v122
    %369 = vmatpush.msra.mxu0 %v118
    %370 = vmatpush.msra.mxu0 %v114
    %371 = vmatpush.msra.mxu0 %v110
    %372 = vmatpush.msra.mxu0 %v106
    %373 = vmatpush.msra.mxu0 %v102
    %374 = vmatpush.msra.mxu0 %v98
    %375 = vmatpush.msra.mxu0 %v94
    %376 = vmatmul.f32.gmra.mxu0 %v90
    %v377 = vpop.f32.mrf.mxu0
    %v378 = vadd.f32 %v352, %v377
    %379 = vdwg.mxu0
    %380 = vmatpush.msra.mxu0 %v218
    %381 = vmatpush.msra.mxu0 %v214
    %382 = vmatpush.msra.mxu0 %v210
    %383 = vmatpush.msra.mxu0 %v206
    %384 = vmatpush.msra.mxu0 %v202
    %385 = vmatpush.msra.mxu0 %v198
    %386 = vmatpush.msra.mxu0 %v194
    %387 = vmatpush.msra.mxu0 %v190
    %388 = vmatpush.msra.mxu0 %v186
    %389 = vmatpush.msra.mxu0 %v182
    %390 = vmatpush.msra.mxu0 %v178
    %391 = vmatpush.msra.mxu0 %v174
    %392 = vmatpush.msra.mxu0 %v170
    %393 = vmatpush.msra.mxu0 %v166
    %394 = vmatpush.msra.mxu0 %v162
    %395 = vmatpush.msra.mxu0 %v158
    %396 = vmatmul.f32.gmra.mxu0 %v91
    %v397 = vpop.f32.mrf.mxu0
    %v398 = vadd.f32 %v378, %v397
    %399 = vdwg.mxu0
    %400 = vmatpush.msra.mxu0 %v282
    %401 = vmatpush.msra.mxu0 %v278
    %402 = vmatpush.msra.mxu0 %v274
    %403 = vmatpush.msra.mxu0 %v270
    %404 = vmatpush.msra.mxu0 %v266
    %405 = vmatpush.msra.mxu0 %v262
    %406 = vmatpush.msra.mxu0 %v258
    %407 = vmatpush.msra.mxu0 %v254
    %408 = vmatpush.msra.mxu0 %v250
    %409 = vmatpush.msra.mxu0 %v246
    %410 = vmatpush.msra.mxu0 %v242
    %411 = vmatpush.msra.mxu0 %v238
    %412 = vmatpush.msra.mxu0 %v234
    %413 = vmatpush.msra.mxu0 %v230
    %414 = vmatpush.msra.mxu0 %v226
    %415 = vmatpush.msra.mxu0 %v222
    %416 = vmatmul.f32.gmra.mxu0 %v92
    %v417 = vpop.f32.mrf.mxu0
    %v418 = vadd.f32 %v398, %v417
    %419 = vdwg.mxu0
    %420 = vmatpush.msra.mxu0 %v346
    %421 = vmatpush.msra.mxu0 %v342
    %422 = vmatpush.msra.mxu0 %v338
    %423 = vmatpush.msra.mxu0 %v334
    %424 = vmatpush.msra.mxu0 %v330
    %425 = vmatpush.msra.mxu0 %v326
    %426 = vmatpush.msra.mxu0 %v322
    %427 = vmatpush.msra.mxu0 %v318
    %428 = vmatpush.msra.mxu0 %v314
    %429 = vmatpush.msra.mxu0 %v310
    %430 = vmatpush.msra.mxu0 %v306
    %431 = vmatpush.msra.mxu0 %v302
    %432 = vmatpush.msra.mxu0 %v298
    %433 = vmatpush.msra.mxu0 %v294
    %434 = vmatpush.msra.mxu0 %v290
    %435 = vmatpush.msra.mxu0 %v286
    %436 = vmatmul.f32.gmra.mxu0 %v93
    %v437 = vpop.f32.mrf.mxu0
    %v438 = vadd.f32 %v418, %v437
    %439 = vdwg.mxu0
    %440 = vmatpush.msra.mxu0 %v155
    %441 = vmatpush.msra.mxu0 %v151
    %442 = vmatpush.msra.mxu0 %v147
    %443 = vmatpush.msra.mxu0 %v143
    %444 = vmatpush.msra.mxu0 %v139
    %445 = vmatpush.msra.mxu0 %v135
    %446 = vmatpush.msra.mxu0 %v131
    %447 = vmatpush.msra.mxu0 %v127
    %448 = vmatpush.msra.mxu0 %v123
    %449 = vmatpush.msra.mxu0 %v119
    %450 = vmatpush.msra.mxu0 %v115
    %451 = vmatpush.msra.mxu0 %v111
    %452 = vmatpush.msra.mxu0 %v107
    %453 = vmatpush.msra.mxu0 %v103
    %454 = vmatpush.msra.mxu0 %v99
    %455 = vmatpush.msra.mxu0 %v95
    %456 = vmatmul.f32.gmra.mxu0 %v90
    %v457 = vpop.f32.mrf.mxu0
    %v458 = vadd.f32 %v353, %v457
    %459 = vdwg.mxu0
    %460 = vmatpush.msra.mxu0 %v219
    %461 = vmatpush.msra.mxu0 %v215
    %462 = vmatpush.msra.mxu0 %v211
    %463 = vmatpush.msra.mxu0 %v207
    %464 = vmatpush.msra.mxu0 %v203
    %465 = vmatpush.msra.mxu0 %v199
    %466 = vmatpush.msra.mxu0 %v195
    %467 = vmatpush.msra.mxu0 %v191
    %468 = vmatpush.msra.mxu0 %v187
    %469 = vmatpush.msra.mxu0 %v183
    %470 = vmatpush.msra.mxu0 %v179
    %471 = vmatpush.msra.mxu0 %v175
    %472 = vmatpush.msra.mxu0 %v171
    %473 = vmatpush.msra.mxu0 %v167
    %474 = vmatpush.msra.mxu0 %v163
    %475 = vmatpush.msra.mxu0 %v159
    %476 = vmatmul.f32.gmra.mxu0 %v91
    %v477 = vpop.f32.mrf.mxu0
    %v478 = vadd.f32 %v458, %v477
    %479 = vdwg.mxu0
    %480 = vmatpush.msra.mxu0 %v283
    %481 = vmatpush.msra.mxu0 %v279
    %482 = vmatpush.msra.mxu0 %v275
    %483 = vmatpush.msra.mxu0 %v271
    %484 = vmatpush.msra.mxu0 %v267
    %485 = vmatpush.msra.mxu0 %v263
    %486 = vmatpush.msra.mxu0 %v259
    %487 = vmatpush.msra.mxu0 %v255
    %488 = vmatpush.msra.mxu0 %v251
    %489 = vmatpush.msra.mxu0 %v247
    %490 = vmatpush.msra.mxu0 %v243
    %491 = vmatpush.msra.mxu0 %v239
    %492 = vmatpush.msra.mxu0 %v235
    %493 = vmatpush.msra.mxu0 %v231
    %494 = vmatpush.msra.mxu0 %v227
    %495 = vmatpush.msra.mxu0 %v223
    %496 = vmatmul.f32.gmra.mxu0 %v92
    %v497 = vpop.f32.mrf.mxu0
    %v498 = vadd.f32 %v478, %v497
    %499 = vdwg.mxu0
    %500 = vmatpush.msra.mxu0 %v347
    %501 = vmatpush.msra.mxu0 %v343
    %502 = vmatpush.msra.mxu0 %v339
    %503 = vmatpush.msra.mxu0 %v335
    %504 = vmatpush.msra.mxu0 %v331
    %505 = vmatpush.msra.mxu0 %v327
    %506 = vmatpush.msra.mxu0 %v323
    %507 = vmatpush.msra.mxu0 %v319
    %508 = vmatpush.msra.mxu0 %v315
    %509 = vmatpush.msra.mxu0 %v311
    %510 = vmatpush.msra.mxu0 %v307
    %511 = vmatpush.msra.mxu0 %v303
    %512 = vmatpush.msra.mxu0 %v299
    %513 = vmatpush.msra.mxu0 %v295
    %514 = vmatpush.msra.mxu0 %v291
    %515 = vmatpush.msra.mxu0 %v287
    %516 = vmatmul.f32.gmra.mxu0 %v93
    %v517 = vpop.f32.mrf.mxu0
    %v518 = vadd.f32 %v498, %v517
    %519 = vdwg.mxu0
    %520 = vmatpush.msra.mxu0 %v156
    %521 = vmatpush.msra.mxu0 %v152
    %522 = vmatpush.msra.mxu0 %v148
    %523 = vmatpush.msra.mxu0 %v144
    %524 = vmatpush.msra.mxu0 %v140
    %525 = vmatpush.msra.mxu0 %v136
    %526 = vmatpush.msra.mxu0 %v132
    %527 = vmatpush.msra.mxu0 %v128
    %528 = vmatpush.msra.mxu0 %v124
    %529 = vmatpush.msra.mxu0 %v120
    %530 = vmatpush.msra.mxu0 %v116
    %531 = vmatpush.msra.mxu0 %v112
    %532 = vmatpush.msra.mxu0 %v108
    %533 = vmatpush.msra.mxu0 %v104
    %534 = vmatpush.msra.mxu0 %v100
    %535 = vmatpush.msra.mxu0 %v96
    %536 = vmatmul.f32.gmra.mxu0 %v90
    %v537 = vpop.f32.mrf.mxu0
    %v538 = vadd.f32 %v354, %v537
    %539 = vdwg.mxu0
    %540 = vmatpush.msra.mxu0 %v220
    %541 = vmatpush.msra.mxu0 %v216
    %542 = vmatpush.msra.mxu0 %v212
    %543 = vmatpush.msra.mxu0 %v208
    %544 = vmatpush.msra.mxu0 %v204
    %545 = vmatpush.msra.mxu0 %v200
    %546 = vmatpush.msra.mxu0 %v196
    %547 = vmatpush.msra.mxu0 %v192
    %548 = vmatpush.msra.mxu0 %v188
    %549 = vmatpush.msra.mxu0 %v184
    %550 = vmatpush.msra.mxu0 %v180
    %551 = vmatpush.msra.mxu0 %v176
    %552 = vmatpush.msra.mxu0 %v172
    %553 = vmatpush.msra.mxu0 %v168
    %554 = vmatpush.msra.mxu0 %v164
    %555 = vmatpush.msra.mxu0 %v160
    %556 = vmatmul.f32.gmra.mxu0 %v91
    %v557 = vpop.f32.mrf.mxu0
    %v558 = vadd.f32 %v538, %v557
    %559 = vdwg.mxu0
    %560 = vmatpush.msra.mxu0 %v284
    %561 = vmatpush.msra.mxu0 %v280
    %562 = vmatpush.msra.mxu0 %v276
    %563 = vmatpush.msra.mxu0 %v272
    %564 = vmatpush.msra.mxu0 %v268
    %565 = vmatpush.msra.mxu0 %v264
    %566 = vmatpush.msra.mxu0 %v260
    %567 = vmatpush.msra.mxu0 %v256
    %568 = vmatpush.msra.mxu0 %v252
    %569 = vmatpush.msra.mxu0 %v248
    %570 = vmatpush.msra.mxu0 %v244
    %571 = vmatpush.msra.mxu0 %v240
    %572 = vmatpush.msra.mxu0 %v236
    %573 = vmatpush.msra.mxu0 %v232
    %574 = vmatpush.msra.mxu0 %v228
    %575 = vmatpush.msra.mxu0 %v224
    %576 = vmatmul.f32.gmra.mxu0 %v92
    %v577 = vpop.f32.mrf.mxu0
    %v578 = vadd.f32 %v558, %v577
    %579 = vdwg.mxu0
    %580 = vmatpush.msra.mxu0 %v348
    %581 = vmatpush.msra.mxu0 %v344
    %582 = vmatpush.msra.mxu0 %v340
    %583 = vmatpush.msra.mxu0 %v336
    %584 = vmatpush.msra.mxu0 %v332
    %585 = vmatpush.msra.mxu0 %v328
    %586 = vmatpush.msra.mxu0 %v324
    %587 = vmatpush.msra.mxu0 %v320
    %588 = vmatpush.msra.mxu0 %v316
    %589 = vmatpush.msra.mxu0 %v312
    %590 = vmatpush.msra.mxu0 %v308
    %591 = vmatpush.msra.mxu0 %v304
    %592 = vmatpush.msra.mxu0 %v300
    %593 = vmatpush.msra.mxu0 %v296
    %594 = vmatpush.msra.mxu0 %v292
    %595 = vmatpush.msra.mxu0 %v288
    %596 = vmatmul.f32.gmra.mxu0 %v93
    %v597 = vpop.f32.mrf.mxu0
    %v598 = vadd.f32 %v578, %v597
    %599 = vdwg.mxu0
    %600 = vmatpush.msra.mxu0 %v157
    %601 = vmatpush.msra.mxu0 %v153
    %602 = vmatpush.msra.mxu0 %v149
    %603 = vmatpush.msra.mxu0 %v145
    %604 = vmatpush.msra.mxu0 %v141
    %605 = vmatpush.msra.mxu0 %v137
    %606 = vmatpush.msra.mxu0 %v133
    %607 = vmatpush.msra.mxu0 %v129
    %608 = vmatpush.msra.mxu0 %v125
    %609 = vmatpush.msra.mxu0 %v121
    %610 = vmatpush.msra.mxu0 %v117
    %611 = vmatpush.msra.mxu0 %v113
    %612 = vmatpush.msra.mxu0 %v109
    %613 = vmatpush.msra.mxu0 %v105
    %614 = vmatpush.msra.mxu0 %v101
    %615 = vmatpush.msra.mxu0 %v97
    %616 = vmatmul.f32.gmra.mxu0 %v90
    %v617 = vpop.f32.mrf.mxu0
    %v618 = vadd.f32 %v355, %v617
    %619 = vdwg.mxu0
    %620 = vmatpush.msra.mxu0 %v221
    %621 = vmatpush.msra.mxu0 %v217
    %622 = vmatpush.msra.mxu0 %v213
    %623 = vmatpush.msra.mxu0 %v209
    %624 = vmatpush.msra.mxu0 %v205
    %625 = vmatpush.msra.mxu0 %v201
    %626 = vmatpush.msra.mxu0 %v197
    %627 = vmatpush.msra.mxu0 %v193
    %628 = vmatpush.msra.mxu0 %v189
    %629 = vmatpush.msra.mxu0 %v185
    %630 = vmatpush.msra.mxu0 %v181
    %631 = vmatpush.msra.mxu0 %v177
    %632 = vmatpush.msra.mxu0 %v173
    %633 = vmatpush.msra.mxu0 %v169
    %634 = vmatpush.msra.mxu0 %v165
    %635 = vmatpush.msra.mxu0 %v161
    %636 = vmatmul.f32.gmra.mxu0 %v91
    %v637 = vpop.f32.mrf.mxu0
    %v638 = vadd.f32 %v618, %v637
    %639 = vdwg.mxu0
    %640 = vmatpush.msra.mxu0 %v285
    %641 = vmatpush.msra.mxu0 %v281
    %642 = vmatpush.msra.mxu0 %v277
    %643 = vmatpush.msra.mxu0 %v273
    %644 = vmatpush.msra.mxu0 %v269
    %645 = vmatpush.msra.mxu0 %v265
    %646 = vmatpush.msra.mxu0 %v261
    %647 = vmatpush.msra.mxu0 %v257
    %648 = vmatpush.msra.mxu0 %v253
    %649 = vmatpush.msra.mxu0 %v249
    %650 = vmatpush.msra.mxu0 %v245
    %651 = vmatpush.msra.mxu0 %v241
    %652 = vmatpush.msra.mxu0 %v237
    %653 = vmatpush.msra.mxu0 %v233
    %654 = vmatpush.msra.mxu0 %v229
    %655 = vmatpush.msra.mxu0 %v225
    %656 = vmatmul.f32.gmra.mxu0 %v92
    %v657 = vpop.f32.mrf.mxu0
    %v658 = vadd.f32 %v638, %v657
    %659 = vdwg.mxu0
    %660 = vmatpush.msra.mxu0 %v349
    %661 = vmatpush.msra.mxu0 %v345
    %662 = vmatpush.msra.mxu0 %v341
    %663 = vmatpush.msra.mxu0 %v337
    %664 = vmatpush.msra.mxu0 %v333
    %665 = vmatpush.msra.mxu0 %v329
    %666 = vmatpush.msra.mxu0 %v325
    %667 = vmatpush.msra.mxu0 %v321
    %668 = vmatpush.msra.mxu0 %v317
    %669 = vmatpush.msra.mxu0 %v313
    %670 = vmatpush.msra.mxu0 %v309
    %671 = vmatpush.msra.mxu0 %v305
    %672 = vmatpush.msra.mxu0 %v301
    %673 = vmatpush.msra.mxu0 %v297
    %674 = vmatpush.msra.mxu0 %v293
    %675 = vmatpush.msra.mxu0 %v289
    %676 = vmatmul.f32.gmra.mxu0 %v93
    %v677 = vpop.f32.mrf.mxu0
    %v678 = vadd.f32 %v658, %v677
    %679 = vdwg.mxu0
    %v680 = vmax.f32 %v438, 0.0
    %v681 = vmax.f32 %v518, 0.0
    %v682 = vmax.f32 %v598, 0.0
    %v683 = vmax.f32 %v678, 0.0
    %v684 = vld [vmem:[#allocation5] sm:$0xff]
    %v685 = vld [vmem:[#allocation5 + $0x8] sm:$0xff]
    %v686 = vld [vmem:[#allocation5 + $0x10] sm:$0xff]
    %v687 = vld [vmem:[#allocation5 + $0x18] sm:$0xff]
    %v688 = vld [vmem:[#allocation5 + $0x20] sm:$0xff]
    %v689 = vld [vmem:[#allocation5 + $0x28] sm:$0xff]
    %v690 = vld [vmem:[#allocation5 + $0x30] sm:$0xff]
    %v691 = vld [vmem:[#allocation5 + $0x38] sm:$0xff]
    %v692 = vld [vmem:[#allocation5 + $0x40] sm:$0xff]
    %v693 = vld [vmem:[#allocation5 + $0x48] sm:$0xff]
    %v694 = vld [vmem:[#allocation5 + $0x50] sm:$0xff]
    %v695 = vld [vmem:[#allocation5 + $0x58] sm:$0xff]
    %v696 = vld [vmem:[#allocation5 + $0x60] sm:$0xff]
    %v697 = vld [vmem:[#allocation5 + $0x68] sm:$0xff]
    %v698 = vld [vmem:[#allocation5 + $0x70] sm:$0xff]
    %v699 = vld [vmem:[#allocation5 + $0x78] sm:$0xff]
    %v700 = vld [vmem:[#allocation5 + $0x80] sm:$0xff]
    %v701 = vld [vmem:[#allocation5 + $0x88] sm:$0xff]
    %v702 = vld [vmem:[#allocation5 + $0x90] sm:$0xff]
    %v703 = vld [vmem:[#allocation5 + $0x98] sm:$0xff]
    %v704 = vld [vmem:[#allocation5 + $0xa0] sm:$0xff]
    %v705 = vld [vmem:[#allocation5 + $0xa8] sm:$0xff]
    %v706 = vld [vmem:[#allocation5 + $0xb0] sm:$0xff]
    %v707 = vld [vmem:[#allocation5 + $0xb8] sm:$0xff]
    %v708 = vld [vmem:[#allocation5 + $0xc0] sm:$0xff]
    %v709 = vld [vmem:[#allocation5 + $0xc8] sm:$0xff]
    %v710 = vld [vmem:[#allocation5 + $0xd0] sm:$0xff]
    %v711 = vld [vmem:[#allocation5 + $0xd8] sm:$0xff]
    %v712 = vld [vmem:[#allocation5 + $0xe0] sm:$0xff]
    %v713 = vld [vmem:[#allocation5 + $0xe8] sm:$0xff]
    %v714 = vld [vmem:[#allocation5 + $0xf0] sm:$0xff]
    %v715 = vld [vmem:[#allocation5 + $0xf8] sm:$0xff]
    %v716 = vld [vmem:[#allocation5 + $0x100] sm:$0xff]
    %v717 = vld [vmem:[#allocation5 + $0x108] sm:$0xff]
    %v718 = vld [vmem:[#allocation5 + $0x110] sm:$0xff]
    %v719 = vld [vmem:[#allocation5 + $0x118] sm:$0xff]
    %v720 = vld [vmem:[#allocation5 + $0x120] sm:$0xff]
    %v721 = vld [vmem:[#allocation5 + $0x128] sm:$0xff]
    %v722 = vld [vmem:[#allocation5 + $0x130] sm:$0xff]
    %v723 = vld [vmem:[#allocation5 + $0x138] sm:$0xff]
    %v724 = vld [vmem:[#allocation5 + $0x140] sm:$0xff]
    %v725 = vld [vmem:[#allocation5 + $0x148] sm:$0xff]
    %v726 = vld [vmem:[#allocation5 + $0x150] sm:$0xff]
    %v727 = vld [vmem:[#allocation5 + $0x158] sm:$0xff]
    %v728 = vld [vmem:[#allocation5 + $0x160] sm:$0xff]
    %v729 = vld [vmem:[#allocation5 + $0x168] sm:$0xff]
    %v730 = vld [vmem:[#allocation5 + $0x170] sm:$0xff]
    %v731 = vld [vmem:[#allocation5 + $0x178] sm:$0xff]
    %v732 = vld [vmem:[#allocation5 + $0x180] sm:$0xff]
    %v733 = vld [vmem:[#allocation5 + $0x188] sm:$0xff]
    %v734 = vld [vmem:[#allocation5 + $0x190] sm:$0xff]
    %v735 = vld [vmem:[#allocation5 + $0x198] sm:$0xff]
    %v736 = vld [vmem:[#allocation5 + $0x1a0] sm:$0xff]
    %v737 = vld [vmem:[#allocation5 + $0x1a8] sm:$0xff]
    %v738 = vld [vmem:[#allocation5 + $0x1b0] sm:$0xff]
    %v739 = vld [vmem:[#allocation5 + $0x1b8] sm:$0xff]
    %v740 = vld [vmem:[#allocation5 + $0x1c0] sm:$0xff]
    %v741 = vld [vmem:[#allocation5 + $0x1c8] sm:$0xff]
    %v742 = vld [vmem:[#allocation5 + $0x1d0] sm:$0xff]
    %v743 = vld [vmem:[#allocation5 + $0x1d8] sm:$0xff]
    %v744 = vld [vmem:[#allocation5 + $0x1e0] sm:$0xff]
    %v745 = vld [vmem:[#allocation5 + $0x1e8] sm:$0xff]
    %v746 = vld [vmem:[#allocation5 + $0x1f0] sm:$0xff]
    %v747 = vld [vmem:[#allocation5 + $0x1f8] sm:$0xff]
    %v748 = vld [vmem:[#allocation5 + $0x200] sm:$0xff]
    %v749 = vld [vmem:[#allocation5 + $0x208] sm:$0xff]
    %v750 = vld [vmem:[#allocation5 + $0x210] sm:$0xff]
    %v751 = vld [vmem:[#allocation5 + $0x218] sm:$0xff]
    %v752 = vld [vmem:[#allocation5 + $0x220] sm:$0xff]
    %v753 = vld [vmem:[#allocation5 + $0x228] sm:$0xff]
    %v754 = vld [vmem:[#allocation5 + $0x230] sm:$0xff]
    %v755 = vld [vmem:[#allocation5 + $0x238] sm:$0xff]
    %v756 = vld [vmem:[#allocation5 + $0x240] sm:$0xff]
    %v757 = vld [vmem:[#allocation5 + $0x248] sm:$0xff]
    %v758 = vld [vmem:[#allocation5 + $0x250] sm:$0xff]
    %v759 = vld [vmem:[#allocation5 + $0x258] sm:$0xff]
    %v760 = vld [vmem:[#allocation5 + $0x260] sm:$0xff]
    %v761 = vld [vmem:[#allocation5 + $0x268] sm:$0xff]
    %v762 = vld [vmem:[#allocation5 + $0x270] sm:$0xff]
    %v763 = vld [vmem:[#allocation5 + $0x278] sm:$0xff]
    %v764 = vld [vmem:[#allocation5 + $0x280] sm:$0xff]
    %v765 = vld [vmem:[#allocation5 + $0x288] sm:$0xff]
    %v766 = vld [vmem:[#allocation5 + $0x290] sm:$0xff]
    %v767 = vld [vmem:[#allocation5 + $0x298] sm:$0xff]
    %v768 = vld [vmem:[#allocation5 + $0x2a0] sm:$0xff]
    %v769 = vld [vmem:[#allocation5 + $0x2a8] sm:$0xff]
    %v770 = vld [vmem:[#allocation5 + $0x2b0] sm:$0xff]
    %v771 = vld [vmem:[#allocation5 + $0x2b8] sm:$0xff]
    %v772 = vld [vmem:[#allocation5 + $0x2c0] sm:$0xff]
    %v773 = vld [vmem:[#allocation5 + $0x2c8] sm:$0xff]
    %v774 = vld [vmem:[#allocation5 + $0x2d0] sm:$0xff]
    %v775 = vld [vmem:[#allocation5 + $0x2d8] sm:$0xff]
    %v776 = vld [vmem:[#allocation5 + $0x2e0] sm:$0xff]
    %v777 = vld [vmem:[#allocation5 + $0x2e8] sm:$0xff]
    %v778 = vld [vmem:[#allocation5 + $0x2f0] sm:$0xff]
    %v779 = vld [vmem:[#allocation5 + $0x2f8] sm:$0xff]
    %v780 = vld [vmem:[#allocation5 + $0x300] sm:$0xff]
    %v781 = vld [vmem:[#allocation5 + $0x308] sm:$0xff]
    %v782 = vld [vmem:[#allocation5 + $0x310] sm:$0xff]
    %v783 = vld [vmem:[#allocation5 + $0x318] sm:$0xff]
    %v784 = vld [vmem:[#allocation5 + $0x320] sm:$0xff]
    %v785 = vld [vmem:[#allocation5 + $0x328] sm:$0xff]
    %v786 = vld [vmem:[#allocation5 + $0x330] sm:$0xff]
    %v787 = vld [vmem:[#allocation5 + $0x338] sm:$0xff]
    %v788 = vld [vmem:[#allocation5 + $0x340] sm:$0xff]
    %v789 = vld [vmem:[#allocation5 + $0x348] sm:$0xff]
    %v790 = vld [vmem:[#allocation5 + $0x350] sm:$0xff]
    %v791 = vld [vmem:[#allocation5 + $0x358] sm:$0xff]
    %v792 = vld [vmem:[#allocation5 + $0x360] sm:$0xff]
    %v793 = vld [vmem:[#allocation5 + $0x368] sm:$0xff]
    %v794 = vld [vmem:[#allocation5 + $0x370] sm:$0xff]
    %v795 = vld [vmem:[#allocation5 + $0x378] sm:$0xff]
    %v796 = vld [vmem:[#allocation5 + $0x380] sm:$0xff]
    %v797 = vld [vmem:[#allocation5 + $0x388] sm:$0xff]
    %v798 = vld [vmem:[#allocation5 + $0x390] sm:$0xff]
    %v799 = vld [vmem:[#allocation5 + $0x398] sm:$0xff]
    %v800 = vld [vmem:[#allocation5 + $0x3a0] sm:$0xff]
    %v801 = vld [vmem:[#allocation5 + $0x3a8] sm:$0xff]
    %v802 = vld [vmem:[#allocation5 + $0x3b0] sm:$0xff]
    %v803 = vld [vmem:[#allocation5 + $0x3b8] sm:$0xff]
    %v804 = vld [vmem:[#allocation5 + $0x3c0] sm:$0xff]
    %v805 = vld [vmem:[#allocation5 + $0x3c8] sm:$0xff]
    %v806 = vld [vmem:[#allocation5 + $0x3d0] sm:$0xff]
    %v807 = vld [vmem:[#allocation5 + $0x3d8] sm:$0xff]
    %v808 = vld [vmem:[#allocation5 + $0x3e0] sm:$0xff]
    %v809 = vld [vmem:[#allocation5 + $0x3e8] sm:$0xff]
    %v810 = vld [vmem:[#allocation5 + $0x3f0] sm:$0xff]
    %v811 = vld [vmem:[#allocation5 + $0x3f8] sm:$0xff]
    %v812 = vld [vmem:[#allocation5 + $0x400] sm:$0xff]
    %v813 = vld [vmem:[#allocation5 + $0x408] sm:$0xff]
    %v814 = vld [vmem:[#allocation5 + $0x410] sm:$0xff]
    %v815 = vld [vmem:[#allocation5 + $0x418] sm:$0xff]
    %v816 = vld [vmem:[#allocation5 + $0x420] sm:$0xff]
    %v817 = vld [vmem:[#allocation5 + $0x428] sm:$0xff]
    %v818 = vld [vmem:[#allocation5 + $0x430] sm:$0xff]
    %v819 = vld [vmem:[#allocation5 + $0x438] sm:$0xff]
    %v820 = vld [vmem:[#allocation5 + $0x440] sm:$0xff]
    %v821 = vld [vmem:[#allocation5 + $0x448] sm:$0xff]
    %v822 = vld [vmem:[#allocation5 + $0x450] sm:$0xff]
    %v823 = vld [vmem:[#allocation5 + $0x458] sm:$0xff]
    %v824 = vld [vmem:[#allocation5 + $0x460] sm:$0xff]
    %v825 = vld [vmem:[#allocation5 + $0x468] sm:$0xff]
    %v826 = vld [vmem:[#allocation5 + $0x470] sm:$0xff]
    %v827 = vld [vmem:[#allocation5 + $0x478] sm:$0xff]
    %v828 = vld [vmem:[#allocation5 + $0x480] sm:$0xff]
    %v829 = vld [vmem:[#allocation5 + $0x488] sm:$0xff]
    %v830 = vld [vmem:[#allocation5 + $0x490] sm:$0xff]
    %v831 = vld [vmem:[#allocation5 + $0x498] sm:$0xff]
    %v832 = vld [vmem:[#allocation5 + $0x4a0] sm:$0xff]
    %v833 = vld [vmem:[#allocation5 + $0x4a8] sm:$0xff]
    %v834 = vld [vmem:[#allocation5 + $0x4b0] sm:$0xff]
    %v835 = vld [vmem:[#allocation5 + $0x4b8] sm:$0xff]
    %v836 = vld [vmem:[#allocation5 + $0x4c0] sm:$0xff]
    %v837 = vld [vmem:[#allocation5 + $0x4c8] sm:$0xff]
    %v838 = vld [vmem:[#allocation5 + $0x4d0] sm:$0xff]
    %v839 = vld [vmem:[#allocation5 + $0x4d8] sm:$0xff]
    %v840 = vld [vmem:[#allocation5 + $0x4e0] sm:$0xff]
    %v841 = vld [vmem:[#allocation5 + $0x4e8] sm:$0xff]
    %v842 = vld [vmem:[#allocation5 + $0x4f0] sm:$0xff]
    %v843 = vld [vmem:[#allocation5 + $0x4f8] sm:$0xff]
    %v844 = vld [vmem:[#allocation5 + $0x500] sm:$0xff]
    %v845 = vld [vmem:[#allocation5 + $0x508] sm:$0xff]
    %v846 = vld [vmem:[#allocation5 + $0x510] sm:$0xff]
    %v847 = vld [vmem:[#allocation5 + $0x518] sm:$0xff]
    %v848 = vld [vmem:[#allocation5 + $0x520] sm:$0xff]
    %v849 = vld [vmem:[#allocation5 + $0x528] sm:$0xff]
    %v850 = vld [vmem:[#allocation5 + $0x530] sm:$0xff]
    %v851 = vld [vmem:[#allocation5 + $0x538] sm:$0xff]
    %v852 = vld [vmem:[#allocation5 + $0x540] sm:$0xff]
    %v853 = vld [vmem:[#allocation5 + $0x548] sm:$0xff]
    %v854 = vld [vmem:[#allocation5 + $0x550] sm:$0xff]
    %v855 = vld [vmem:[#allocation5 + $0x558] sm:$0xff]
    %v856 = vld [vmem:[#allocation5 + $0x560] sm:$0xff]
    %v857 = vld [vmem:[#allocation5 + $0x568] sm:$0xff]
    %v858 = vld [vmem:[#allocation5 + $0x570] sm:$0xff]
    %v859 = vld [vmem:[#allocation5 + $0x578] sm:$0xff]
    %v860 = vld [vmem:[#allocation5 + $0x580] sm:$0xff]
    %v861 = vld [vmem:[#allocation5 + $0x588] sm:$0xff]
    %v862 = vld [vmem:[#allocation5 + $0x590] sm:$0xff]
    %v863 = vld [vmem:[#allocation5 + $0x598] sm:$0xff]
    %v864 = vld [vmem:[#allocation5 + $0x5a0] sm:$0xff]
    %v865 = vld [vmem:[#allocation5 + $0x5a8] sm:$0xff]
    %v866 = vld [vmem:[#allocation5 + $0x5b0] sm:$0xff]
    %v867 = vld [vmem:[#allocation5 + $0x5b8] sm:$0xff]
    %v868 = vld [vmem:[#allocation5 + $0x5c0] sm:$0xff]
    %v869 = vld [vmem:[#allocation5 + $0x5c8] sm:$0xff]
    %v870 = vld [vmem:[#allocation5 + $0x5d0] sm:$0xff]
    %v871 = vld [vmem:[#allocation5 + $0x5d8] sm:$0xff]
    %v872 = vld [vmem:[#allocation5 + $0x5e0] sm:$0xff]
    %v873 = vld [vmem:[#allocation5 + $0x5e8] sm:$0xff]
    %v874 = vld [vmem:[#allocation5 + $0x5f0] sm:$0xff]
    %v875 = vld [vmem:[#allocation5 + $0x5f8] sm:$0xff]
    %v876 = vld [vmem:[#allocation5 + $0x600] sm:$0xff]
    %v877 = vld [vmem:[#allocation5 + $0x608] sm:$0xff]
    %v878 = vld [vmem:[#allocation5 + $0x610] sm:$0xff]
    %v879 = vld [vmem:[#allocation5 + $0x618] sm:$0xff]
    %v880 = vld [vmem:[#allocation5 + $0x620] sm:$0xff]
    %v881 = vld [vmem:[#allocation5 + $0x628] sm:$0xff]
    %v882 = vld [vmem:[#allocation5 + $0x630] sm:$0xff]
    %v883 = vld [vmem:[#allocation5 + $0x638] sm:$0xff]
    %v884 = vld [vmem:[#allocation5 + $0x640] sm:$0xff]
    %v885 = vld [vmem:[#allocation5 + $0x648] sm:$0xff]
    %v886 = vld [vmem:[#allocation5 + $0x650] sm:$0xff]
    %v887 = vld [vmem:[#allocation5 + $0x658] sm:$0xff]
    %v888 = vld [vmem:[#allocation5 + $0x660] sm:$0xff]
    %v889 = vld [vmem:[#allocation5 + $0x668] sm:$0xff]
    %v890 = vld [vmem:[#allocation5 + $0x670] sm:$0xff]
    %v891 = vld [vmem:[#allocation5 + $0x678] sm:$0xff]
    %v892 = vld [vmem:[#allocation5 + $0x680] sm:$0xff]
    %v893 = vld [vmem:[#allocation5 + $0x688] sm:$0xff]
    %v894 = vld [vmem:[#allocation5 + $0x690] sm:$0xff]
    %v895 = vld [vmem:[#allocation5 + $0x698] sm:$0xff]
    %v896 = vld [vmem:[#allocation5 + $0x6a0] sm:$0xff]
    %v897 = vld [vmem:[#allocation5 + $0x6a8] sm:$0xff]
    %v898 = vld [vmem:[#allocation5 + $0x6b0] sm:$0xff]
    %v899 = vld [vmem:[#allocation5 + $0x6b8] sm:$0xff]
    %v900 = vld [vmem:[#allocation5 + $0x6c0] sm:$0xff]
    %v901 = vld [vmem:[#allocation5 + $0x6c8] sm:$0xff]
    %v902 = vld [vmem:[#allocation5 + $0x6d0] sm:$0xff]
    %v903 = vld [vmem:[#allocation5 + $0x6d8] sm:$0xff]
    %v904 = vld [vmem:[#allocation5 + $0x6e0] sm:$0xff]
    %v905 = vld [vmem:[#allocation5 + $0x6e8] sm:$0xff]
    %v906 = vld [vmem:[#allocation5 + $0x6f0] sm:$0xff]
    %v907 = vld [vmem:[#allocation5 + $0x6f8] sm:$0xff]
    %v908 = vld [vmem:[#allocation5 + $0x700] sm:$0xff]
    %v909 = vld [vmem:[#allocation5 + $0x708] sm:$0xff]
    %v910 = vld [vmem:[#allocation5 + $0x710] sm:$0xff]
    %v911 = vld [vmem:[#allocation5 + $0x718] sm:$0xff]
    %v912 = vld [vmem:[#allocation5 + $0x720] sm:$0xff]
    %v913 = vld [vmem:[#allocation5 + $0x728] sm:$0xff]
    %v914 = vld [vmem:[#allocation5 + $0x730] sm:$0xff]
    %v915 = vld [vmem:[#allocation5 + $0x738] sm:$0xff]
    %v916 = vld [vmem:[#allocation5 + $0x740] sm:$0xff]
    %v917 = vld [vmem:[#allocation5 + $0x748] sm:$0xff]
    %v918 = vld [vmem:[#allocation5 + $0x750] sm:$0xff]
    %v919 = vld [vmem:[#allocation5 + $0x758] sm:$0xff]
    %v920 = vld [vmem:[#allocation5 + $0x760] sm:$0xff]
    %v921 = vld [vmem:[#allocation5 + $0x768] sm:$0xff]
    %v922 = vld [vmem:[#allocation5 + $0x770] sm:$0xff]
    %v923 = vld [vmem:[#allocation5 + $0x778] sm:$0xff]
    %v924 = vld [vmem:[#allocation5 + $0x780] sm:$0xff]
    %v925 = vld [vmem:[#allocation5 + $0x788] sm:$0xff]
    %v926 = vld [vmem:[#allocation5 + $0x790] sm:$0xff]
    %v927 = vld [vmem:[#allocation5 + $0x798] sm:$0xff]
    %v928 = vld [vmem:[#allocation5 + $0x7a0] sm:$0xff]
    %v929 = vld [vmem:[#allocation5 + $0x7a8] sm:$0xff]
    %v930 = vld [vmem:[#allocation5 + $0x7b0] sm:$0xff]
    %v931 = vld [vmem:[#allocation5 + $0x7b8] sm:$0xff]
    %v932 = vld [vmem:[#allocation5 + $0x7c0] sm:$0xff]
    %v933 = vld [vmem:[#allocation5 + $0x7c8] sm:$0xff]
    %v934 = vld [vmem:[#allocation5 + $0x7d0] sm:$0xff]
    %v935 = vld [vmem:[#allocation5 + $0x7d8] sm:$0xff]
    %v936 = vld [vmem:[#allocation5 + $0x7e0] sm:$0xff]
    %v937 = vld [vmem:[#allocation5 + $0x7e8] sm:$0xff]
    %v938 = vld [vmem:[#allocation5 + $0x7f0] sm:$0xff]
    %v939 = vld [vmem:[#allocation5 + $0x7f8] sm:$0xff]
    %v940 = vld [vmem:[%s5] sm:$0xf]
    %v942 = vperm.slane %v940, 0
    %v943 = vperm.slane %v940, 1
    %v944 = vperm.slane %v940, 2
    %v945 = vperm.slane %v940, 3
    %950 = vmatpush.msra.mxu0 %v744
    %951 = vmatpush.msra.mxu0 %v740
    %952 = vmatpush.msra.mxu0 %v736
    %953 = vmatpush.msra.mxu0 %v732
    %954 = vmatpush.msra.mxu0 %v728
    %955 = vmatpush.msra.mxu0 %v724
    %956 = vmatpush.msra.mxu0 %v720
    %957 = vmatpush.msra.mxu0 %v716
    %958 = vmatpush.msra.mxu0 %v712
    %959 = vmatpush.msra.mxu0 %v708
    %960 = vmatpush.msra.mxu0 %v704
    %961 = vmatpush.msra.mxu0 %v700
    %962 = vmatpush.msra.mxu0 %v696
    %963 = vmatpush.msra.mxu0 %v692
    %964 = vmatpush.msra.mxu0 %v688
    %965 = vmatpush.msra.mxu0 %v684
    %966 = vmatmul.f32.gmra.mxu0 %v680
    %v967 = vpop.f32.mrf.mxu0
    %v968 = vadd.f32 %v942, %v967
    %969 = vdwg.mxu0
    %970 = vmatpush.msra.mxu0 %v808
    %971 = vmatpush.msra.mxu0 %v804
    %972 = vmatpush.msra.mxu0 %v800
    %973 = vmatpush.msra.mxu0 %v796
    %974 = vmatpush.msra.mxu0 %v792
    %975 = vmatpush.msra.mxu0 %v788
    %976 = vmatpush.msra.mxu0 %v784
    %977 = vmatpush.msra.mxu0 %v780
    %978 = vmatpush.msra.mxu0 %v776
    %979 = vmatpush.msra.mxu0 %v772
    %980 = vmatpush.msra.mxu0 %v768
    %981 = vmatpush.msra.mxu0 %v764
    %982 = vmatpush.msra.mxu0 %v760
    %983 = vmatpush.msra.mxu0 %v756
    %984 = vmatpush.msra.mxu0 %v752
    %985 = vmatpush.msra.mxu0 %v748
    %986 = vmatmul.f32.gmra.mxu0 %v681
    %v987 = vpop.f32.mrf.mxu0
    %v988 = vadd.f32 %v968, %v987
    %989 = vdwg.mxu0
    %990 = vmatpush.msra.mxu0 %v872
    %991 = vmatpush.msra.mxu0 %v868
    %992 = vmatpush.msra.mxu0 %v864
    %993 = vmatpush.msra.mxu0 %v860
    %994 = vmatpush.msra.mxu0 %v856
    %995 = vmatpush.msra.mxu0 %v852
    %996 = vmatpush.msra.mxu0 %v848
    %997 = vmatpush.msra.mxu0 %v844
    %998 = vmatpush.msra.mxu0 %v840
    %999 = vmatpush.msra.mxu0 %v836
    %1000 = vmatpush.msra.mxu0 %v832
    %1001 = vmatpush.msra.mxu0 %v828
    %1002 = vmatpush.msra.mxu0 %v824
    %1003 = vmatpush.msra.mxu0 %v820
    %1004 = vmatpush.msra.mxu0 %v816
    %1005 = vmatpush.msra.mxu0 %v812
    %1006 = vmatmul.f32.gmra.mxu0 %v682
    %v1007 = vpop.f32.mrf.mxu0
    %v1008 = vadd.f32 %v988, %v1007
    %1009 = vdwg.mxu0
    %1010 = vmatpush.msra.mxu0 %v936
    %1011 = vmatpush.msra.mxu0 %v932
    %1012 = vmatpush.msra.mxu0 %v928
    %1013 = vmatpush.msra.mxu0 %v924
    %1014 = vmatpush.msra.mxu0 %v920
    %1015 = vmatpush.msra.mxu0 %v916
    %1016 = vmatpush.msra.mxu0 %v912
    %1017 = vmatpush.msra.mxu0 %v908
    %1018 = vmatpush.msra.mxu0 %v904
    %1019 = vmatpush.msra.mxu0 %v900
    %1020 = vmatpush.msra.mxu0 %v896
    %1021 = vmatpush.msra.mxu0 %v892
    %1022 = vmatpush.msra.mxu0 %v888
    %1023 = vmatpush.msra.mxu0 %v884
    %1024 = vmatpush.msra.mxu0 %v880
    %1025 = vmatpush.msra.mxu0 %v876
    %1026 = vmatmul.f32.gmra.mxu0 %v683
    %v1027 = vpop.f32.mrf.mxu0
    %v1028 = vadd.f32 %v1008, %v1027
    %1029 = vdwg.mxu0
    %1030 = vmatpush.msra.mxu0 %v745
    %1031 = vmatpush.msra.mxu0 %v741
    %1032 = vmatpush.msra.mxu0 %v737
    %1033 = vmatpush.msra.mxu0 %v733
    %1034 = vmatpush.msra.mxu0 %v729
    %1035 = vmatpush.msra.mxu0 %v725
    %1036 = vmatpush.msra.mxu0 %v721
    %1037 = vmatpush.msra.mxu0 %v717
    %1038 = vmatpush.msra.mxu0 %v713
    %1039 = vmatpush.msra.mxu0 %v709
    %1040 = vmatpush.msra.mxu0 %v705
    %1041 = vmatpush.msra.mxu0 %v701
    %1042 = vmatpush.msra.mxu0 %v697
    %1043 = vmatpush.msra.mxu0 %v693
    %1044 = vmatpush.msra.mxu0 %v689
    %1045 = vmatpush.msra.mxu0 %v685
    %1046 = vmatmul.f32.gmra.mxu0 %v680
    %v1047 = vpop.f32.mrf.mxu0
    %v1048 = vadd.f32 %v943, %v1047
    %1049 = vdwg.mxu0
    %1050 = vmatpush.msra.mxu0 %v809
    %1051 = vmatpush.msra.mxu0 %v805
    %1052 = vmatpush.msra.mxu0 %v801
    %1053 = vmatpush.msra.mxu0 %v797
    %1054 = vmatpush.msra.mxu0 %v793
    %1055 = vmatpush.msra.mxu0 %v789
    %1056 = vmatpush.msra.mxu0 %v785
    %1057 = vmatpush.msra.mxu0 %v781
    %1058 = vmatpush.msra.mxu0 %v777
    %1059 = vmatpush.msra.mxu0 %v773
    %1060 = vmatpush.msra.mxu0 %v769
    %1061 = vmatpush.msra.mxu0 %v765
    %1062 = vmatpush.msra.mxu0 %v761
    %1063 = vmatpush.msra.mxu0 %v757
    %1064 = vmatpush.msra.mxu0 %v753
    %1065 = vmatpush.msra.mxu0 %v749
    %1066 = vmatmul.f32.gmra.mxu0 %v681
    %v1067 = vpop.f32.mrf.mxu0
    %v1068 = vadd.f32 %v1048, %v1067
    %1069 = vdwg.mxu0
    %1070 = vmatpush.msra.mxu0 %v873
    %1071 = vmatpush.msra.mxu0 %v869
    %1072 = vmatpush.msra.mxu0 %v865
    %1073 = vmatpush.msra.mxu0 %v861
    %1074 = vmatpush.msra.mxu0 %v857
    %1075 = vmatpush.msra.mxu0 %v853
    %1076 = vmatpush.msra.mxu0 %v849
    %1077 = vmatpush.msra.mxu0 %v845
    %1078 = vmatpush.msra.mxu0 %v841
    %1079 = vmatpush.msra.mxu0 %v837
    %1080 = vmatpush.msra.mxu0 %v833
    %1081 = vmatpush.msra.mxu0 %v829
    %1082 = vmatpush.msra.mxu0 %v825
    %1083 = vmatpush.msra.mxu0 %v821
    %1084 = vmatpush.msra.mxu0 %v817
    %1085 = vmatpush.msra.mxu0 %v813
    %1086 = vmatmul.f32.gmra.mxu0 %v682
    %v1087 = vpop.f32.mrf.mxu0
    %v1088 = vadd.f32 %v1068, %v1087
    %1089 = vdwg.mxu0
    %1090 = vmatpush.msra.mxu0 %v937
    %1091 = vmatpush.msra.mxu0 %v933
    %1092 = vmatpush.msra.mxu0 %v929
    %1093 = vmatpush.msra.mxu0 %v925
    %1094 = vmatpush.msra.mxu0 %v921
    %1095 = vmatpush.msra.mxu0 %v917
    %1096 = vmatpush.msra.mxu0 %v913
    %1097 = vmatpush.msra.mxu0 %v909
    %1098 = vmatpush.msra.mxu0 %v905
    %1099 = vmatpush.msra.mxu0 %v901
    %1100 = vmatpush.msra.mxu0 %v897
    %1101 = vmatpush.msra.mxu0 %v893
    %1102 = vmatpush.msra.mxu0 %v889
    %1103 = vmatpush.msra.mxu0 %v885
    %1104 = vmatpush.msra.mxu0 %v881
    %1105 = vmatpush.msra.mxu0 %v877
    %1106 = vmatmul.f32.gmra.mxu0 %v683
    %v1107 = vpop.f32.mrf.mxu0
    %v1108 = vadd.f32 %v1088, %v1107
    %1109 = vdwg.mxu0
    %1110 = vmatpush.msra.mxu0 %v746
    %1111 = vmatpush.msra.mxu0 %v742
    %1112 = vmatpush.msra.mxu0 %v738
    %1113 = vmatpush.msra.mxu0 %v734
    %1114 = vmatpush.msra.mxu0 %v730
    %1115 = vmatpush.msra.mxu0 %v726
    %1116 = vmatpush.msra.mxu0 %v722
    %1117 = vmatpush.msra.mxu0 %v718
    %1118 = vmatpush.msra.mxu0 %v714
    %1119 = vmatpush.msra.mxu0 %v710
    %1120 = vmatpush.msra.mxu0 %v706
    %1121 = vmatpush.msra.mxu0 %v702
    %1122 = vmatpush.msra.mxu0 %v698
    %1123 = vmatpush.msra.mxu0 %v694
    %1124 = vmatpush.msra.mxu0 %v690
    %1125 = vmatpush.msra.mxu0 %v686
    %1126 = vmatmul.f32.gmra.mxu0 %v680
    %v1127 = vpop.f32.mrf.mxu0
    %v1128 = vadd.f32 %v944, %v1127
    %1129 = vdwg.mxu0
    %1130 = vmatpush.msra.mxu0 %v810
    %1131 = vmatpush.msra.mxu0 %v806
    %1132 = vmatpush.msra.mxu0 %v802
    %1133 = vmatpush.msra.mxu0 %v798
    %1134 = vmatpush.msra.mxu0 %v794
    %1135 = vmatpush.msra.mxu0 %v790
    %1136 = vmatpush.msra.mxu0 %v786
    %1137 = vmatpush.msra.mxu0 %v782
    %1138 = vmatpush.msra.mxu0 %v778
    %1139 = vmatpush.msra.mxu0 %v774
    %1140 = vmatpush.msra.mxu0 %v770
    %1141 = vmatpush.msra.mxu0 %v766
    %1142 = vmatpush.msra.mxu0 %v762
    %1143 = vmatpush.msra.mxu0 %v758
    %1144 = vmatpush.msra.mxu0 %v754
    %1145 = vmatpush.msra.mxu0 %v750
    %1146 = vmatmul.f32.gmra.mxu0 %v681
    %v1147 = vpop.f32.mrf.mxu0
    %v1148 = vadd.f32 %v1128, %v1147
    %1149 = vdwg.mxu0
    %1150 = vmatpush.msra.mxu0 %v874
    %1151 = vmatpush.msra.mxu0 %v870
    %1152 = vmatpush.msra.mxu0 %v866
    %1153 = vmatpush.msra.mxu0 %v862
    %1154 = vmatpush.msra.mxu0 %v858
    %1155 = vmatpush.msra.mxu0 %v854
    %1156 = vmatpush.msra.mxu0 %v850
    %1157 = vmatpush.msra.mxu0 %v846
    %1158 = vmatpush.msra.mxu0 %v842
    %1159 = vmatpush.msra.mxu0 %v838
    %1160 = vmatpush.msra.mxu0 %v834
    %1161 = vmatpush.msra.mxu0 %v830
    %1162 = vmatpush.msra.mxu0 %v826
    %1163 = vmatpush.msra.mxu0 %v822
    %1164 = vmatpush.msra.mxu0 %v818
    %1165 = vmatpush.msra.mxu0 %v814
    %1166 = vmatmul.f32.gmra.mxu0 %v682
    %v1167 = vpop.f32.mrf.mxu0
    %v1168 = vadd.f32 %v1148, %v1167
    %1169 = vdwg.mxu0
    %1170 = vmatpush.msra.mxu0 %v938
    %1171 = vmatpush.msra.mxu0 %v934
    %1172 = vmatpush.msra.mxu0 %v930
    %1173 = vmatpush.msra.mxu0 %v926
    %1174 = vmatpush.msra.mxu0 %v922
    %1175 = vmatpush.msra.mxu0 %v918
    %1176 = vmatpush.msra.mxu0 %v914
    %1177 = vmatpush.msra.mxu0 %v910
    %1178 = vmatpush.msra.mxu0 %v906
    %1179 = vmatpush.msra.mxu0 %v902
    %1180 = vmatpush.msra.mxu0 %v898
    %1181 = vmatpush.msra.mxu0 %v894
    %1182 = vmatpush.msra.mxu0 %v890
    %1183 = vmatpush.msra.mxu0 %v886
    %1184 = vmatpush.msra.mxu0 %v882
    %1185 = vmatpush.msra.mxu0 %v878
    %1186 = vmatmul.f32.gmra.mxu0 %v683
    %v1187 = vpop.f32.mrf.mxu0
    %v1188 = vadd.f32 %v1168, %v1187
    %1189 = vdwg.mxu0
    %1190 = vmatpush.msra.mxu0 %v747
    %1191 = vmatpush.msra.mxu0 %v743
    %1192 = vmatpush.msra.mxu0 %v739
    %1193 = vmatpush.msra.mxu0 %v735
    %1194 = vmatpush.msra.mxu0 %v731
    %1195 = vmatpush.msra.mxu0 %v727
    %1196 = vmatpush.msra.mxu0 %v723
    %1197 = vmatpush.msra.mxu0 %v719
    %1198 = vmatpush.msra.mxu0 %v715
    %1199 = vmatpush.msra.mxu0 %v711
    %1200 = vmatpush.msra.mxu0 %v707
    %1201 = vmatpush.msra.mxu0 %v703
    %1202 = vmatpush.msra.mxu0 %v699
    %1203 = vmatpush.msra.mxu0 %v695
    %1204 = vmatpush.msra.mxu0 %v691
    %1205 = vmatpush.msra.mxu0 %v687
    %1206 = vmatmul.f32.gmra.mxu0 %v680
    %v1207 = vpop.f32.mrf.mxu0
    %v1208 = vadd.f32 %v945, %v1207
    %1209 = vdwg.mxu0
    %1210 = vmatpush.msra.mxu0 %v811
    %1211 = vmatpush.msra.mxu0 %v807
    %1212 = vmatpush.msra.mxu0 %v803
    %1213 = vmatpush.msra.mxu0 %v799
    %1214 = vmatpush.msra.mxu0 %v795
    %1215 = vmatpush.msra.mxu0 %v791
    %1216 = vmatpush.msra.mxu0 %v787
    %1217 = vmatpush.msra.mxu0 %v783
    %1218 = vmatpush.msra.mxu0 %v779
    %1219 = vmatpush.msra.mxu0 %v775
    %1220 = vmatpush.msra.mxu0 %v771
    %1221 = vmatpush.msra.mxu0 %v767
    %1222 = vmatpush.msra.mxu0 %v763
    %1223 = vmatpush.msra.mxu0 %v759
    %1224 = vmatpush.msra.mxu0 %v755
    %1225 = vmatpush.msra.mxu0 %v751
    %1226 = vmatmul.f32.gmra.mxu0 %v681
    %v1227 = vpop.f32.mrf.mxu0
    %v1228 = vadd.f32 %v1208, %v1227
    %1229 = vdwg.mxu0
    %1230 = vmatpush.msra.mxu0 %v875
    %1231 = vmatpush.msra.mxu0 %v871
    %1232 = vmatpush.msra.mxu0 %v867
    %1233 = vmatpush.msra.mxu0 %v863
    %1234 = vmatpush.msra.mxu0 %v859
    %1235 = vmatpush.msra.mxu0 %v855
    %1236 = vmatpush.msra.mxu0 %v851
    %1237 = vmatpush.msra.mxu0 %v847
    %1238 = vmatpush.msra.mxu0 %v843
    %1239 = vmatpush.msra.mxu0 %v839
    %1240 = vmatpush.msra.mxu0 %v835
    %1241 = vmatpush.msra.mxu0 %v831
    %1242 = vmatpush.msra.mxu0 %v827
    %1243 = vmatpush.msra.mxu0 %v823
    %1244 = vmatpush.msra.mxu0 %v819
    %1245 = vmatpush.msra.mxu0 %v815
    %1246 = vmatmul.f32.gmra.mxu0 %v682
    %v1247 = vpop.f32.mrf.mxu0
    %v1248 = vadd.f32 %v1228, %v1247
    %1249 = vdwg.mxu0
    %1250 = vmatpush.msra.mxu0 %v939
    %1251 = vmatpush.msra.mxu0 %v935
    %1252 = vmatpush.msra.mxu0 %v931
    %1253 = vmatpush.msra.mxu0 %v927
    %1254 = vmatpush.msra.mxu0 %v923
    %1255 = vmatpush.msra.mxu0 %v919
    %1256 = vmatpush.msra.mxu0 %v915
    %1257 = vmatpush.msra.mxu0 %v911
    %1258 = vmatpush.msra.mxu0 %v907
    %1259 = vmatpush.msra.mxu0 %v903
    %1260 = vmatpush.msra.mxu0 %v899
    %1261 = vmatpush.msra.mxu0 %v895
    %1262 = vmatpush.msra.mxu0 %v891
    %1263 = vmatpush.msra.mxu0 %v887
    %1264 = vmatpush.msra.mxu0 %v883
    %1265 = vmatpush.msra.mxu0 %v879
    %1266 = vmatmul.f32.gmra.mxu0 %v683
    %v1267 = vpop.f32.mrf.mxu0
    %v1268 = vadd.f32 %v1248, %v1267
    %1269 = vdwg.mxu0
    %v1270 = vmax.f32 %v1028, 0.0
    %v1271 = vmax.f32 %v1108, 0.0
    %v1272 = vmax.f32 %v1188, 0.0
    %v1273 = vmax.f32 %v1268, 0.0
    %v1274 = vld [vmem:[%s6] sm:$0xff]
    %v1275 = vld [vmem:[%s6 + $0x8] sm:$0xff]
    %v1276 = vld [vmem:[%s6 + $0x10] sm:$0xff]
    %v1277 = vld [vmem:[%s6 + $0x18] sm:$0xff]
    %v1278 = vld [vmem:[%s6 + $0x20] sm:$0xff]
    %v1279 = vld [vmem:[%s6 + $0x28] sm:$0xff]
    %v1280 = vld [vmem:[%s6 + $0x30] sm:$0xff]
    %v1281 = vld [vmem:[%s6 + $0x38] sm:$0xff]
    %v1282 = vld [vmem:[%s6 + $0x40] sm:$0xff]
    %v1283 = vld [vmem:[%s6 + $0x48] sm:$0xff]
    %v1284 = vld [vmem:[%s6 + $0x50] sm:$0xff]
    %v1285 = vld [vmem:[%s6 + $0x58] sm:$0xff]
    %v1286 = vld [vmem:[%s6 + $0x60] sm:$0xff]
    %v1287 = vld [vmem:[%s6 + $0x68] sm:$0xff]
    %v1288 = vld [vmem:[%s6 + $0x70] sm:$0xff]
    %v1289 = vld [vmem:[%s6 + $0x78] sm:$0xff]
    %v1290 = vld [vmem:[%s6 + $0x80] sm:$0xff]
    %v1291 = vld [vmem:[%s6 + $0x88] sm:$0xff]
    %v1292 = vld [vmem:[%s6 + $0x90] sm:$0xff]
    %v1293 = vld [vmem:[%s6 + $0x98] sm:$0xff]
    %v1294 = vld [vmem:[%s6 + $0xa0] sm:$0xff]
    %v1295 = vld [vmem:[%s6 + $0xa8] sm:$0xff]
    %v1296 = vld [vmem:[%s6 + $0xb0] sm:$0xff]
    %v1297 = vld [vmem:[%s6 + $0xb8] sm:$0xff]
    %v1298 = vld [vmem:[%s6 + $0xc0] sm:$0xff]
    %v1299 = vld [vmem:[%s6 + $0xc8] sm:$0xff]
    %v1300 = vld [vmem:[%s6 + $0xd0] sm:$0xff]
    %v1301 = vld [vmem:[%s6 + $0xd8] sm:$0xff]
    %v1302 = vld [vmem:[%s6 + $0xe0] sm:$0xff]
    %v1303 = vld [vmem:[%s6 + $0xe8] sm:$0xff]
    %v1304 = vld [vmem:[%s6 + $0xf0] sm:$0xff]
    %v1305 = vld [vmem:[%s6 + $0xf8] sm:$0xff]
    %v1306 = vld [vmem:[%s6 + $0x100] sm:$0xff]
    %v1307 = vld [vmem:[%s6 + $0x108] sm:$0xff]
    %v1308 = vld [vmem:[%s6 + $0x110] sm:$0xff]
    %v1309 = vld [vmem:[%s6 + $0x118] sm:$0xff]
    %v1310 = vld [vmem:[%s6 + $0x120] sm:$0xff]
    %v1311 = vld [vmem:[%s6 + $0x128] sm:$0xff]
    %v1312 = vld [vmem:[%s6 + $0x130] sm:$0xff]
    %v1313 = vld [vmem:[%s6 + $0x138] sm:$0xff]
    %v1314 = vld [vmem:[%s6 + $0x140] sm:$0xff]
    %v1315 = vld [vmem:[%s6 + $0x148] sm:$0xff]
    %v1316 = vld [vmem:[%s6 + $0x150] sm:$0xff]
    %v1317 = vld [vmem:[%s6 + $0x158] sm:$0xff]
    %v1318 = vld [vmem:[%s6 + $0x160] sm:$0xff]
    %v1319 = vld [vmem:[%s6 + $0x168] sm:$0xff]
    %v1320 = vld [vmem:[%s6 + $0x170] sm:$0xff]
    %v1321 = vld [vmem:[%s6 + $0x178] sm:$0xff]
    %v1322 = vld [vmem:[%s6 + $0x180] sm:$0xff]
    %v1323 = vld [vmem:[%s6 + $0x188] sm:$0xff]
    %v1324 = vld [vmem:[%s6 + $0x190] sm:$0xff]
    %v1325 = vld [vmem:[%s6 + $0x198] sm:$0xff]
    %v1326 = vld [vmem:[%s6 + $0x1a0] sm:$0xff]
    %v1327 = vld [vmem:[%s6 + $0x1a8] sm:$0xff]
    %v1328 = vld [vmem:[%s6 + $0x1b0] sm:$0xff]
    %v1329 = vld [vmem:[%s6 + $0x1b8] sm:$0xff]
    %v1330 = vld [vmem:[%s6 + $0x1c0] sm:$0xff]
    %v1331 = vld [vmem:[%s6 + $0x1c8] sm:$0xff]
    %v1332 = vld [vmem:[%s6 + $0x1d0] sm:$0xff]
    %v1333 = vld [vmem:[%s6 + $0x1d8] sm:$0xff]
    %v1334 = vld [vmem:[%s6 + $0x1e0] sm:$0xff]
    %v1335 = vld [vmem:[%s6 + $0x1e8] sm:$0xff]
    %v1336 = vld [vmem:[%s6 + $0x1f0] sm:$0xff]
    %v1337 = vld [vmem:[%s6 + $0x1f8] sm:$0xff]
    %v1338 = vld [vmem:[%s7] sm:$0x1]
    %v1340 = vperm.slane %v1338, 0
    %1342 = vmatpush.msra.mxu0 %v1289
    %1343 = vmatpush.msra.mxu0 %v1288
    %1344 = vmatpush.msra.mxu0 %v1287
    %1345 = vmatpush.msra.mxu0 %v1286
    %1346 = vmatpush.msra.mxu0 %v1285
    %1347 = vmatpush.msra.mxu0 %v1284
    %1348 = vmatpush.msra.mxu0 %v1283
    %1349 = vmatpush.msra.mxu0 %v1282
    %1350 = vmatpush.msra.mxu0 %v1281
    %1351 = vmatpush.msra.mxu0 %v1280
    %1352 = vmatpush.msra.mxu0 %v1279
    %1353 = vmatpush.msra.mxu0 %v1278
    %1354 = vmatpush.msra.mxu0 %v1277
    %1355 = vmatpush.msra.mxu0 %v1276
    %1356 = vmatpush.msra.mxu0 %v1275
    %1357 = vmatpush.msra.mxu0 %v1274
    %1358 = vmatmul.f32.gmra.mxu0 %v1270
    %v1359 = vpop.f32.mrf.mxu0
    %v1360 = vadd.f32 %v1340, %v1359
    %1361 = vdwg.mxu0
    %1362 = vmatpush.msra.mxu0 %v1305
    %1363 = vmatpush.msra.mxu0 %v1304
    %1364 = vmatpush.msra.mxu0 %v1303
    %1365 = vmatpush.msra.mxu0 %v1302
    %1366 = vmatpush.msra.mxu0 %v1301
    %1367 = vmatpush.msra.mxu0 %v1300
    %1368 = vmatpush.msra.mxu0 %v1299
    %1369 = vmatpush.msra.mxu0 %v1298
    %1370 = vmatpush.msra.mxu0 %v1297
    %1371 = vmatpush.msra.mxu0 %v1296
    %1372 = vmatpush.msra.mxu0 %v1295
    %1373 = vmatpush.msra.mxu0 %v1294
    %1374 = vmatpush.msra.mxu0 %v1293
    %1375 = vmatpush.msra.mxu0 %v1292
    %1376 = vmatpush.msra.mxu0 %v1291
    %1377 = vmatpush.msra.mxu0 %v1290
    %1378 = vmatmul.f32.gmra.mxu0 %v1271
    %v1379 = vpop.f32.mrf.mxu0
    %v1380 = vadd.f32 %v1360, %v1379
    %1381 = vdwg.mxu0
    %1382 = vmatpush.msra.mxu0 %v1321
    %1383 = vmatpush.msra.mxu0 %v1320
    %1384 = vmatpush.msra.mxu0 %v1319
    %1385 = vmatpush.msra.mxu0 %v1318
    %1386 = vmatpush.msra.mxu0 %v1317
    %1387 = vmatpush.msra.mxu0 %v1316
    %1388 = vmatpush.msra.mxu0 %v1315
    %1389 = vmatpush.msra.mxu0 %v1314
    %1390 = vmatpush.msra.mxu0 %v1313
    %1391 = vmatpush.msra.mxu0 %v1312
    %1392 = vmatpush.msra.mxu0 %v1311
    %1393 = vmatpush.msra.mxu0 %v1310
    %1394 = vmatpush.msra.mxu0 %v1309
    %1395 = vmatpush.msra.mxu0 %v1308
    %1396 = vmatpush.msra.mxu0 %v1307
    %1397 = vmatpush.msra.mxu0 %v1306
    %1398 = vmatmul.f32.gmra.mxu0 %v1272
    %v1399 = vpop.f32.mrf.mxu0
    %v1400 = vadd.f32 %v1380, %v1399
    %1401 = vdwg.mxu0
    %1402 = vmatpush.msra.mxu0 %v1337
    %1403 = vmatpush.msra.mxu0 %v1336
    %1404 = vmatpush.msra.mxu0 %v1335
    %1405 = vmatpush.msra.mxu0 %v1334
    %1406 = vmatpush.msra.mxu0 %v1333
    %1407 = vmatpush.msra.mxu0 %v1332
    %1408 = vmatpush.msra.mxu0 %v1331
    %1409 = vmatpush.msra.mxu0 %v1330
    %1410 = vmatpush.msra.mxu0 %v1329
    %1411 = vmatpush.msra.mxu0 %v1328
    %1412 = vmatpush.msra.mxu0 %v1327
    %1413 = vmatpush.msra.mxu0 %v1326
    %1414 = vmatpush.msra.mxu0 %v1325
    %1415 = vmatpush.msra.mxu0 %v1324
    %1416 = vmatpush.msra.mxu0 %v1323
    %1417 = vmatpush.msra.mxu0 %v1322
    %1418 = vmatmul.f32.gmra.mxu0 %v1273
    %v1419 = vpop.f32.mrf.mxu0
    %v1420 = vadd.f32 %v1400, %v1419
    %1421 = vdwg.mxu0
    %v1422 = vmax.f32 %v1420, 0.0
    %v1423 = vld [vmem:[%s1] sm:$0xff]
    %v1424 = vld [vmem:[%s8] sm:$0xff]
    %v1425 = vld [vmem:[%s9] sm:$0x1]
    %v1427 = vperm.slane %v1425, 0
    %vm1429 = vcmask 64512
    %v1431 = vsel %vm1429, %v1423, 0
    %1433 = vmatpush.msra.mxu0 0.0
    %1434 = vmatpush.msra.mxu0 0.0
    %1435 = vmatpush.msra.mxu0 0.0
    %1436 = vmatpush.msra.mxu0 0.0
    %1437 = vmatpush.msra.mxu0 0.0
    %1438 = vmatpush.msra.mxu0 0.0
    %1439 = vmatpush.msra.mxu0 0.0
    %1440 = vmatpush.msra.mxu0 0.0
    %1441 = vmatpush.msra.mxu0 0.0
    %1442 = vmatpush.msra.mxu0 0.0
    %1443 = vmatpush.msra.mxu0 0.0
    %1444 = vmatpush.msra.mxu0 0.0
    %1445 = vmatpush.msra.mxu0 0.0
    %1446 = vmatpush.msra.mxu0 0.0
    %1447 = vmatpush.msra.mxu0 0.0
    %1448 = vmatpush.msra.mxu0 %v1424
    %1449 = vmatmul.f32.gmra.mxu0 %v1431
    %v1450 = vpop.f32.mrf.mxu0
    %v1451 = vadd.f32 %v1427, %v1450
    %1452 = vdwg.mxu0
    %v1453 = vmax.f32 %v1451, 0.0
    %v1454 = vld [vmem:[%s10] sm:$0xff]
    %v1455 = vld [vmem:[%s10 + $0x8] sm:$0xff]
    %v1456 = vld [vmem:[%s10 + $0x10] sm:$0xff]
    %v1457 = vld [vmem:[%s10 + $0x18] sm:$0xff]
    %v1458 = vld [vmem:[%s10 + $0x20] sm:$0xff]
    %v1459 = vld [vmem:[%s10 + $0x28] sm:$0xff]
    %v1460 = vld [vmem:[%s10 + $0x30] sm:$0xff]
    %v1461 = vld [vmem:[%s10 + $0x38] sm:$0xff]
    %v1462 = vld [vmem:[%s11] sm:$0x1]
    %v1464 = vperm.slane %v1462, 0
    %vm1466 = vcmask 523264
    %v1468 = vsel %vm1466, %v1453, 0
    %1470 = vmatpush.msra.mxu0 0.0
    %1471 = vmatpush.msra.mxu0 0.0
    %1472 = vmatpush.msra.mxu0 0.0
    %1473 = vmatpush.msra.mxu0 0.0
    %1474 = vmatpush.msra.mxu0 0.0
    %1475 = vmatpush.msra.mxu0 0.0
    %1476 = vmatpush.msra.mxu0 0.0
    %1477 = vmatpush.msra.mxu0 0.0
    %1478 = vmatpush.msra.mxu0 %v1461
    %1479 = vmatpush.msra.mxu0 %v1460
    %1480 = vmatpush.msra.mxu0 %v1459
    %1481 = vmatpush.msra.mxu0 %v1458
    %1482 = vmatpush.msra.mxu0 %v1457
    %1483 = vmatpush.msra.mxu0 %v1456
    %1484 = vmatpush.msra.mxu0 %v1455
    %1485 = vmatpush.msra.mxu0 %v1454
    %1486 = vmatmul.f32.gmra.mxu0 %v1468
    %v1487 = vpop.f32.mrf.mxu0
    %v1488 = vadd.f32 %v1464, %v1487
    %1489 = vdwg.mxu0
    %v1490 = vmax.f32 %v1488, 0.0
    %v1491 = vld [vmem:[%s12] sm:$0xff]
    %v1492 = vld [vmem:[%s12 + $0x8] sm:$0xff]
    %v1493 = vld [vmem:[%s12 + $0x10] sm:$0xff]
    %v1494 = vld [vmem:[%s12 + $0x18] sm:$0xff]
    %v1495 = vld [vmem:[%s13] sm:$0xff]
    %v1496 = vld [vmem:[%s13 + $0x8] sm:$0xff]
    %v1497 = vld [vmem:[%s13 + $0x10] sm:$0xff]
    %v1498 = vld [vmem:[%s13 + $0x18] sm:$0xff]
    %vm1499 = vcmask 261120
    %v1501 = vsel %vm1499, %v1490, 0
    %1503 = vmatpush.msra.mxu0 0.0
    %1504 = vmatpush.msra.mxu0 0.0
    %1505 = vmatpush.msra.mxu0 0.0
    %1506 = vmatpush.msra.mxu0 0.0
    %1507 = vmatpush.msra.mxu0 0.0
    %1508 = vmatpush.msra.mxu0 0.0
    %1509 = vmatpush.msra.mxu0 0.0
    %1510 = vmatpush.msra.mxu0 0.0
    %1511 = vmatpush.msra.mxu0 0.0
    %1512 = vmatpush.msra.mxu0 0.0
    %1513 = vmatpush.msra.mxu0 0.0
    %1514 = vmatpush.msra.mxu0 0.0
    %1515 = vmatpush.msra.mxu0 %v1498
    %1516 = vmatpush.msra.mxu0 %v1497
    %1517 = vmatpush.msra.mxu0 %v1496
    %1518 = vmatpush.msra.mxu0 %v1495
    %1519 = vmatmul.f32.gmra.mxu0 %v1501
    %v1520 = vpop.f32.mrf.mxu0
    %v1521 = vadd.f32 0.0, %v1520
    %1522 = vdwg.mxu0
    %v1524 = vsel %vm1499, %v1422, 0
    %1526 = vmatpush.msra.mxu0 0.0
    %1527 = vmatpush.msra.mxu0 0.0
    %1528 = vmatpush.msra.mxu0 0.0
    %1529 = vmatpush.msra.mxu0 0.0
    %1530 = vmatpush.msra.mxu0 0.0
    %1531 = vmatpush.msra.mxu0 0.0
    %1532 = vmatpush.msra.mxu0 0.0
    %1533 = vmatpush.msra.mxu0 0.0
    %1534 = vmatpush.msra.mxu0 0.0
    %1535 = vmatpush.msra.mxu0 0.0
    %1536 = vmatpush.msra.mxu0 0.0
    %1537 = vmatpush.msra.mxu0 0.0
    %1538 = vmatpush.msra.mxu0 %v1494
    %1539 = vmatpush.msra.mxu0 %v1493
    %1540 = vmatpush.msra.mxu0 %v1492
    %1541 = vmatpush.msra.mxu0 %v1491
    %1542 = vmatmul.f32.gmra.mxu0 %v1524
    %v1543 = vpop.f32.mrf.mxu0
    %v1544 = vadd.f32 %v1521, %v1543
    %1545 = vdwg.mxu0
    %v1546 = vld [vmem:[%s14] sm:$0x1]
    %v1548 = vperm.slane %v1546, 0
    %v1550 = vadd.f32 %v1544, %v1548
    %v1551 = vmax.f32 %v1550, 0.0
    %v1552 = vld [vmem:[%s15] sm:$0xff]
    %v1553 = vld [vmem:[%s15 + $0x8] sm:$0xff]
    %v1554 = vld [vmem:[%s15 + $0x10] sm:$0xff]
    %v1555 = vld [vmem:[%s15 + $0x18] sm:$0xff]
    %v1556 = vld [vmem:[%s15 + $0x20] sm:$0xff]
    %v1557 = vld [vmem:[%s15 + $0x28] sm:$0xff]
    %v1558 = vld [vmem:[%s15 + $0x30] sm:$0xff]
    %v1559 = vld [vmem:[%s15 + $0x38] sm:$0xff]
    %v1560 = vld [vmem:[#allocation2] sm:$0x1]
    %v1562 = vperm.slane %v1560, 0
    %v1565 = vsel %vm1466, %v1551, 0
    %1567 = vmatpush.msra.mxu0 0.0
    %1568 = vmatpush.msra.mxu0 0.0
    %1569 = vmatpush.msra.mxu0 0.0
    %1570 = vmatpush.msra.mxu0 0.0
    %1571 = vmatpush.msra.mxu0 0.0
    %1572 = vmatpush.msra.mxu0 0.0
    %1573 = vmatpush.msra.mxu0 0.0
    %1574 = vmatpush.msra.mxu0 0.0
    %1575 = vmatpush.msra.mxu0 %v1559
    %1576 = vmatpush.msra.mxu0 %v1558
    %1577 = vmatpush.msra.mxu0 %v1557
    %1578 = vmatpush.msra.mxu0 %v1556
    %1579 = vmatpush.msra.mxu0 %v1555
    %1580 = vmatpush.msra.mxu0 %v1554
    %1581 = vmatpush.msra.mxu0 %v1553
    %1582 = vmatpush.msra.mxu0 %v1552
    %1583 = vmatmul.f32.gmra.mxu0 %v1565
    %v1584 = vpop.f32.mrf.mxu0
    %v1585 = vadd.f32 %v1562, %v1584
    %1586 = vdwg.mxu0
    %vm1587 = vcmask 7168
    %1588 = vst.msk [vmem:[%s17] sm:$0xff] %vm1587, %v1585
    // Predicated region
    $region78: #{tpu_custom_call.1} parent=1 // pred_check
      _
    $region79: #{tpu_custom_call.1} parent=1 // pred_check_branch
      %1590 = sbr.rel (0) target = $region81
    $region80: #{tpu_custom_call.1} parent=1 // pred_region
      _
    $region81: #{tpu_custom_call.1} parent=1 // pred_fallthru
      _
    // Predicated region
    $region82: #{tpu_custom_call.1} parent=1 // pred_check
      _
    $region83: #{tpu_custom_call.1} parent=1 // pred_check_branch
      %1592 = sbr.rel (0) target = $region85
    $region84: #{tpu_custom_call.1} parent=1 // pred_region
      _
    $region85: #{tpu_custom_call.1} parent=1 // pred_fallthru
      _
    %1593 = vsyncpa [#allocation4], 1
    %1594 = vsyncpa [#allocation6], 1

</llo_original>
